<compile_context>
chip_gen: v5e
topology: v5e:2x2
jax: 0.10.0
libtpu: 0.0.40
codegen_flags: <defaults>
</compile_context>

<pallas_src>
import functools

import jax
import jax.numpy as jnp
import numpy as np
from jax import lax
from jax.experimental import pallas as pl
from jax.experimental.pallas import tpu as pltpu

_DEFAULT_VMEM_LIMIT = 32 * 1024 * 1024


@functools.lru_cache(maxsize=None)
def _vmem_limit_bytes():
    """Generation-aware scoped-VMEM limit (v7x: 64 MiB phys, v5e/v6e: 128 MiB)."""
    try:
        info_fn = getattr(pltpu, "get_tpu_info", None)
        cap = getattr(info_fn(), "vmem_capacity_bytes", None) if info_fn else None
    except Exception:  # query unavailable (e.g. interpret mode) -> safe default
        cap = None
    if not cap:
        return _DEFAULT_VMEM_LIMIT
    return max(_DEFAULT_VMEM_LIMIT, min((int(cap) * 3) // 4, 100 * 1024 * 1024))


# ------------------------------ fused kernel ---------------------------------
def _fused_route_kernel(x_ref, w1_ref, b1_ref, w2_ref, b2_ref, o_ref,
                        *, kh, kw, width, oh, ow):
    """relu(conv3x3(relu(conv1x1(x) + b1)) + b2) for one image, fully in VMEM.

    x_ref : [1, HP*W, C_in]  bf16  flat pixels (KH-1 dummy rows appended so the
                                   flat tap windows below never run off the end)
    w1_ref: [C_in, C_mid]    bf16        b1_ref: [1, C_mid] f32
    w2_ref: [KH*KW, C_mid, C_out] bf16 (tap-major)   b2_ref: [1, C_out] f32
    o_ref : [1, OH, OW, C_out] f32
    """
    c_out = w2_ref.shape[-1]
    m2 = oh * width                     # flat output positions incl. row-wrap cols

    # ---- layer 0: 1x1 conv + ReLU == one matmul over every (padded) pixel ----
    y1 = jnp.dot(x_ref[0], w1_ref[...], preferred_element_type=jnp.float32)
    y1 = jnp.maximum(y1 + b1_ref[...], 0.0)            # f32 epilogue (v5e-safe)
    y1 = y1.astype(jnp.bfloat16)                        # bf16 MXU input, stays on-chip

    # ---- layer 1: KHxKW valid conv + ReLU via flat-pixel taps ----------------
    # tap (ki,kj) contributes y1_flat[q + ki*W + kj] to output position q=r*W+j;
    # columns j >= OW are row-wrap garbage and are dropped before the store.
    acc = jnp.broadcast_to(b2_ref[...], (m2, c_out))    # bias folded into init
    for t in range(kh * kw):                            # 9 fat M=OH*W MXU pushes
        ki, kj = divmod(t, kw)
        off = ki * width + kj
        tap = y1[off:off + m2, :]                       # [M2, C_mid] shifted window
        acc = acc + jnp.dot(tap, w2_ref[t], preferred_element_type=jnp.float32)
    y2 = jnp.maximum(acc, 0.0)                          # f32 epilogue
    y2 = y2.reshape(oh, width, c_out)[:, :ow, :]        # drop row-wrap columns
    o_ref[0] = y2.astype(o_ref.dtype)                   # single block store / image


# --------------------------------- wrapper -----------------------------------
def _fused_route(x_nhwc, w1, b1, w2, b2):
    n, h, width, c_in = x_nhwc.shape
    c_mid = int(w1.shape[0])
    c_out, c_mid2, kh, kw = (int(d) for d in w2.shape)
    assert w1.shape[1:] == (c_in, 1, 1), "Route layer 0 must be a 1x1 conv"
    assert c_mid2 == c_mid
    oh, ow = h - kh + 1, width - kw + 1
    m1 = h * width
    m1p = m1 + (kh - 1) * width          # dummy rows: flat taps never index OOB
    m2 = oh * width

    x_flat = x_nhwc.reshape(n, m1, c_in).astype(jnp.bfloat16)
    x_flat = jnp.pad(x_flat, ((0, 0), (0, m1p - m1), (0, 0)))

    w1m = w1.reshape(c_mid, c_in).T.astype(jnp.bfloat16)           # [C_in, C_mid]
    b1r = b1.reshape(1, c_mid).astype(jnp.float32)
    # OIHW -> [KH*KW, C_mid, C_out] so that w2t[ki*kw+kj, c, o] == w2[o, c, ki, kj]
    w2t = jnp.transpose(w2, (2, 3, 1, 0)).reshape(kh * kw, c_mid, c_out)
    w2t = w2t.astype(jnp.bfloat16)
    b2r = b2.reshape(1, c_out).astype(jnp.float32)

    kernel = functools.partial(_fused_route_kernel,
                               kh=kh, kw=kw, width=width, oh=oh, ow=ow)
    flops = 2 * n * (m1p * c_in * c_mid + m2 * kh * kw * c_mid * c_out)
    bytes_accessed = (x_flat.size * 2 + w1m.size * 2 + w2t.size * 2
                      + b1r.size * 4 + b2r.size * 4 + n * oh * ow * c_out * 4)

    return pl.pallas_call(
        kernel,
        out_shape=jax.ShapeDtypeStruct((n, oh, ow, c_out), jnp.float32),
        grid=(n,),                                      # one image per grid step
        in_specs=[
            pl.BlockSpec((1, m1p, c_in), lambda i: (i, 0, 0)),
            pl.BlockSpec((c_in, c_mid), lambda i: (0, 0)),       # resident
            pl.BlockSpec((1, c_mid), lambda i: (0, 0)),
            pl.BlockSpec((kh * kw, c_mid, c_out), lambda i: (0, 0, 0)),
            pl.BlockSpec((1, c_out), lambda i: (0, 0)),
        ],
        out_specs=pl.BlockSpec((1, oh, ow, c_out), lambda i: (i, 0, 0, 0)),
        compiler_params=pltpu.CompilerParams(
            dimension_semantics=("parallel",),
            vmem_limit_bytes=_vmem_limit_bytes()),
        cost_estimate=pl.CostEstimate(
            flops=flops, transcendentals=0, bytes_accessed=bytes_accessed),
    )(x_flat, w1m, b1r, w2t, b2r)


@jax.jit
def inception_base_route(x_nchw, weights, biases):
    """InceptionBaseRoute.forward with
       Route = [('conv', {'kernel': 1, 'padding': 0}),
                ('conv', {'kernel': 3, 'padding': 0})]   (stride 1, no BN).
    NCHW in / NCHW out (PyTorch semantics); the whole route runs fused in
    flat-pixel NHWC form inside one Pallas kernel.
    """
    (w1, w2), (b1, b2) = weights, biases
    x_nhwc = jnp.transpose(x_nchw, (0, 2, 3, 1))        # NCHW -> NHWC once
    y = _fused_route(x_nhwc, w1, b1, w2, b2)
    return jnp.transpose(y, (0, 3, 1, 2))               # NHWC -> NCHW once
# TODO(synk): stride != 1, padding != 0 and the BatchNorm branch
#             (CONV_BACTH_NOR=True) are not part of the configured Route and
#             are not implemented here.


# ------------------------------------ main ------------------------------------
if __name__ == "__main__":
    # InceptionBaseRoute assembled with in_chanel=4 and Chanel=[16, 8]:
    #   slayer0: ConvRelu(4, 16, kernel=1, padding=0)
    #   slayer1: ConvRelu(16, 8, kernel=3, padding=0)
    N, C_IN, H, W = 2, 4, 16, 16
    C_MID, C_OUT = 16, 8

    key = jax.random.PRNGKey(0)
    kx, k1, kb1, k2, kb2 = jax.random.split(key, 5)
    x = jax.random.normal(kx, (N, C_IN, H, W), jnp.float32)

    def conv_init(kw_key, kb_key, o, c, k):
        fan_in = c * k * k
        bound = 1.0 / np.sqrt(fan_in)
        w = jax.random.uniform(kw_key, (o, c, k, k), jnp.float32, -bound, bound)
        b = jax.random.uniform(kb_key, (o,), jnp.float32, -bound, bound)
        return w, b

    w1, b1 = conv_init(k1, kb1, C_MID, C_IN, 1)
    w2, b2 = conv_init(k2, kb2, C_OUT, C_MID, 3)

    y = inception_base_route(x, (w1, w2), (b1, b2))
    y = jax.block_until_ready(y)

    # Reference: XLA conv with the same bf16-input rounding / f32 accumulation.
    def ref_layer(xr, w, b, stride, padding):
        yr = lax.conv_general_dilated(
            xr.astype(jnp.bfloat16), w.astype(jnp.bfloat16),
            window_strides=(stride, stride),
            padding=[(padding, padding), (padding, padding)],
            dimension_numbers=("NCHW", "OIHW", "NCHW"),
            preferred_element_type=jnp.float32)
        return jnp.maximum(yr + b[None, :, None, None], 0.0)

    y_ref = ref_layer(ref_layer(x, w1, b1, 1, 0), w2, b2, 1, 0)

    assert y.shape == (N, C_OUT, H - 2, W - 2), y.shape
    np.testing.assert_allclose(np.asarray(y), np.asarray(y_ref),
                               rtol=1e-2, atol=1e-3)
    print("KERNEL_OK")
</pallas_src>

<mosaic_0001>
module attributes {stable_mosaic.version = 11 : i64} {
  func.func @_fused_route_kernel(%arg0: i32, %arg1: memref<1x288x4xbf16, #tpu.memory_space<vmem>>, %arg2: memref<4x16xbf16, #tpu.memory_space<vmem>>, %arg3: memref<1x16xf32, #tpu.memory_space<vmem>>, %arg4: memref<9x16x8xbf16, #tpu.memory_space<vmem>>, %arg5: memref<1x8xf32, #tpu.memory_space<vmem>>, %arg6: memref<1x14x14x8xf32, #tpu.memory_space<vmem>>) attributes {dimension_semantics = [#tpu.dimension_semantics<parallel>], iteration_bounds = array<i64: 2>, scalar_prefetch = 0 : i64, scratch_operands = 0 : i64, tpu.core_type = #tpu.core_type<tc>, window_params = [{transform_indices = @transform_0, window_bounds = array<i64: 1, 288, 4>}, {pipeline_mode = #tpu.pipeline_mode<synchronous>, transform_indices = @transform_1, window_bounds = array<i64: 4, 16>}, {pipeline_mode = #tpu.pipeline_mode<synchronous>, transform_indices = @transform_2, window_bounds = array<i64: 1, 16>}, {pipeline_mode = #tpu.pipeline_mode<synchronous>, transform_indices = @transform_3, window_bounds = array<i64: 9, 16, 8>}, {pipeline_mode = #tpu.pipeline_mode<synchronous>, transform_indices = @transform_4, window_bounds = array<i64: 1, 8>}, {transform_indices = @transform_5, window_bounds = array<i64: 1, 14, 14, 8>}]} {
    %c0 = arith.constant 0 : index
    %c0_0 = arith.constant 0 : index
    %c0_1 = arith.constant 0 : index
    %0 = vector.load %arg1[%c0, %c0_0, %c0_1] : memref<1x288x4xbf16, #tpu.memory_space<vmem>>, vector<1x288x4xbf16>
    %1 = vector.shape_cast %0 : vector<1x288x4xbf16> to vector<288x4xbf16>
    %c0_2 = arith.constant 0 : index
    %c0_3 = arith.constant 0 : index
    %2 = vector.load %arg2[%c0_2, %c0_3] : memref<4x16xbf16, #tpu.memory_space<vmem>>, vector<4x16xbf16>
    %cst = arith.constant dense<0.000000e+00> : vector<288x16xf32>
    %3 = tpu.matmul %1, %2, %cst {dimension_numbers = #tpu.dot_dimension_numbers<[1], [0], [0], [1], [0, 0, 1, 1], [], []>} : vector<288x4xbf16>, vector<4x16xbf16>, vector<288x16xf32> -> vector<288x16xf32>
    %c0_4 = arith.constant 0 : index
    %c0_5 = arith.constant 0 : index
    %4 = vector.load %arg3[%c0_4, %c0_5] : memref<1x16xf32, #tpu.memory_space<vmem>>, vector<1x16xf32>
    %5 = vector.broadcast %4 : vector<1x16xf32> to vector<288x16xf32>
    %6 = arith.addf %3, %5 : vector<288x16xf32>
    %cst_6 = arith.constant 0.000000e+00 : f32
    %7 = vector.broadcast %cst_6 : f32 to vector<288x16xf32>
    %8 = arith.maximumf %6, %7 : vector<288x16xf32>
    %9 = arith.truncf %8 : vector<288x16xf32> to vector<288x16xbf16>
    %c0_7 = arith.constant 0 : index
    %c0_8 = arith.constant 0 : index
    %10 = vector.load %arg5[%c0_7, %c0_8] : memref<1x8xf32, #tpu.memory_space<vmem>>, vector<1x8xf32>
    %11 = vector.shape_cast %10 : vector<1x8xf32> to vector<1x8xf32>
    %12 = vector.broadcast %11 : vector<1x8xf32> to vector<224x8xf32>
    %13 = vector.extract_strided_slice %9 {offsets = [0, 0], sizes = [224, 16], strides = [1, 1]} : vector<288x16xbf16> to vector<224x16xbf16>
    %c0_9 = arith.constant 0 : index
    %c0_10 = arith.constant 0 : index
    %c0_11 = arith.constant 0 : index
    %14 = vector.load %arg4[%c0_9, %c0_10, %c0_11] : memref<9x16x8xbf16, #tpu.memory_space<vmem>>, vector<1x16x8xbf16>
    %15 = vector.shape_cast %14 : vector<1x16x8xbf16> to vector<16x8xbf16>
    %cst_12 = arith.constant dense<0.000000e+00> : vector<224x8xf32>
    %16 = tpu.matmul %13, %15, %cst_12 {dimension_numbers = #tpu.dot_dimension_numbers<[1], [0], [0], [1], [0, 0, 1, 1], [], []>} : vector<224x16xbf16>, vector<16x8xbf16>, vector<224x8xf32> -> vector<224x8xf32>
    %17 = arith.addf %12, %16 : vector<224x8xf32>
    %18 = vector.extract_strided_slice %9 {offsets = [1, 0], sizes = [224, 16], strides = [1, 1]} : vector<288x16xbf16> to vector<224x16xbf16>
    %c1 = arith.constant 1 : index
    %c0_13 = arith.constant 0 : index
    %c0_14 = arith.constant 0 : index
    %19 = vector.load %arg4[%c1, %c0_13, %c0_14] : memref<9x16x8xbf16, #tpu.memory_space<vmem>>, vector<1x16x8xbf16>
    %20 = vector.shape_cast %19 : vector<1x16x8xbf16> to vector<16x8xbf16>
    %cst_15 = arith.constant dense<0.000000e+00> : vector<224x8xf32>
    %21 = tpu.matmul %18, %20, %cst_15 {dimension_numbers = #tpu.dot_dimension_numbers<[1], [0], [0], [1], [0, 0, 1, 1], [], []>} : vector<224x16xbf16>, vector<16x8xbf16>, vector<224x8xf32> -> vector<224x8xf32>
    %22 = arith.addf %17, %21 : vector<224x8xf32>
    %23 = vector.extract_strided_slice %9 {offsets = [2, 0], sizes = [224, 16], strides = [1, 1]} : vector<288x16xbf16> to vector<224x16xbf16>
    %c2 = arith.constant 2 : index
    %c0_16 = arith.constant 0 : index
    %c0_17 = arith.constant 0 : index
    %24 = vector.load %arg4[%c2, %c0_16, %c0_17] : memref<9x16x8xbf16, #tpu.memory_space<vmem>>, vector<1x16x8xbf16>
    %25 = vector.shape_cast %24 : vector<1x16x8xbf16> to vector<16x8xbf16>
    %cst_18 = arith.constant dense<0.000000e+00> : vector<224x8xf32>
    %26 = tpu.matmul %23, %25, %cst_18 {dimension_numbers = #tpu.dot_dimension_numbers<[1], [0], [0], [1], [0, 0, 1, 1], [], []>} : vector<224x16xbf16>, vector<16x8xbf16>, vector<224x8xf32> -> vector<224x8xf32>
    %27 = arith.addf %22, %26 : vector<224x8xf32>
    %28 = vector.extract_strided_slice %9 {offsets = [16, 0], sizes = [224, 16], strides = [1, 1]} : vector<288x16xbf16> to vector<224x16xbf16>
    %c3 = arith.constant 3 : index
    %c0_19 = arith.constant 0 : index
    %c0_20 = arith.constant 0 : index
    %29 = vector.load %arg4[%c3, %c0_19, %c0_20] : memref<9x16x8xbf16, #tpu.memory_space<vmem>>, vector<1x16x8xbf16>
    %30 = vector.shape_cast %29 : vector<1x16x8xbf16> to vector<16x8xbf16>
    %cst_21 = arith.constant dense<0.000000e+00> : vector<224x8xf32>
    %31 = tpu.matmul %28, %30, %cst_21 {dimension_numbers = #tpu.dot_dimension_numbers<[1], [0], [0], [1], [0, 0, 1, 1], [], []>} : vector<224x16xbf16>, vector<16x8xbf16>, vector<224x8xf32> -> vector<224x8xf32>
    %32 = arith.addf %27, %31 : vector<224x8xf32>
    %33 = vector.extract_strided_slice %9 {offsets = [17, 0], sizes = [224, 16], strides = [1, 1]} : vector<288x16xbf16> to vector<224x16xbf16>
    %c4 = arith.constant 4 : index
    %c0_22 = arith.constant 0 : index
    %c0_23 = arith.constant 0 : index
    %34 = vector.load %arg4[%c4, %c0_22, %c0_23] : memref<9x16x8xbf16, #tpu.memory_space<vmem>>, vector<1x16x8xbf16>
    %35 = vector.shape_cast %34 : vector<1x16x8xbf16> to vector<16x8xbf16>
    %cst_24 = arith.constant dense<0.000000e+00> : vector<224x8xf32>
    %36 = tpu.matmul %33, %35, %cst_24 {dimension_numbers = #tpu.dot_dimension_numbers<[1], [0], [0], [1], [0, 0, 1, 1], [], []>} : vector<224x16xbf16>, vector<16x8xbf16>, vector<224x8xf32> -> vector<224x8xf32>
    %37 = arith.addf %32, %36 : vector<224x8xf32>
    %38 = vector.extract_strided_slice %9 {offsets = [18, 0], sizes = [224, 16], strides = [1, 1]} : vector<288x16xbf16> to vector<224x16xbf16>
    %c5 = arith.constant 5 : index
    %c0_25 = arith.constant 0 : index
    %c0_26 = arith.constant 0 : index
    %39 = vector.load %arg4[%c5, %c0_25, %c0_26] : memref<9x16x8xbf16, #tpu.memory_space<vmem>>, vector<1x16x8xbf16>
    %40 = vector.shape_cast %39 : vector<1x16x8xbf16> to vector<16x8xbf16>
    %cst_27 = arith.constant dense<0.000000e+00> : vector<224x8xf32>
    %41 = tpu.matmul %38, %40, %cst_27 {dimension_numbers = #tpu.dot_dimension_numbers<[1], [0], [0], [1], [0, 0, 1, 1], [], []>} : vector<224x16xbf16>, vector<16x8xbf16>, vector<224x8xf32> -> vector<224x8xf32>
    %42 = arith.addf %37, %41 : vector<224x8xf32>
    %43 = vector.extract_strided_slice %9 {offsets = [32, 0], sizes = [224, 16], strides = [1, 1]} : vector<288x16xbf16> to vector<224x16xbf16>
    %c6 = arith.constant 6 : index
    %c0_28 = arith.constant 0 : index
    %c0_29 = arith.constant 0 : index
    %44 = vector.load %arg4[%c6, %c0_28, %c0_29] : memref<9x16x8xbf16, #tpu.memory_space<vmem>>, vector<1x16x8xbf16>
    %45 = vector.shape_cast %44 : vector<1x16x8xbf16> to vector<16x8xbf16>
    %cst_30 = arith.constant dense<0.000000e+00> : vector<224x8xf32>
    %46 = tpu.matmul %43, %45, %cst_30 {dimension_numbers = #tpu.dot_dimension_numbers<[1], [0], [0], [1], [0, 0, 1, 1], [], []>} : vector<224x16xbf16>, vector<16x8xbf16>, vector<224x8xf32> -> vector<224x8xf32>
    %47 = arith.addf %42, %46 : vector<224x8xf32>
    %48 = vector.extract_strided_slice %9 {offsets = [33, 0], sizes = [224, 16], strides = [1, 1]} : vector<288x16xbf16> to vector<224x16xbf16>
    %c7 = arith.constant 7 : index
    %c0_31 = arith.constant 0 : index
    %c0_32 = arith.constant 0 : index
    %49 = vector.load %arg4[%c7, %c0_31, %c0_32] : memref<9x16x8xbf16, #tpu.memory_space<vmem>>, vector<1x16x8xbf16>
    %50 = vector.shape_cast %49 : vector<1x16x8xbf16> to vector<16x8xbf16>
    %cst_33 = arith.constant dense<0.000000e+00> : vector<224x8xf32>
    %51 = tpu.matmul %48, %50, %cst_33 {dimension_numbers = #tpu.dot_dimension_numbers<[1], [0], [0], [1], [0, 0, 1, 1], [], []>} : vector<224x16xbf16>, vector<16x8xbf16>, vector<224x8xf32> -> vector<224x8xf32>
    %52 = arith.addf %47, %51 : vector<224x8xf32>
    %53 = vector.extract_strided_slice %9 {offsets = [34, 0], sizes = [224, 16], strides = [1, 1]} : vector<288x16xbf16> to vector<224x16xbf16>
    %c8 = arith.constant 8 : index
    %c0_34 = arith.constant 0 : index
    %c0_35 = arith.constant 0 : index
    %54 = vector.load %arg4[%c8, %c0_34, %c0_35] : memref<9x16x8xbf16, #tpu.memory_space<vmem>>, vector<1x16x8xbf16>
    %55 = vector.shape_cast %54 : vector<1x16x8xbf16> to vector<16x8xbf16>
    %cst_36 = arith.constant dense<0.000000e+00> : vector<224x8xf32>
    %56 = tpu.matmul %53, %55, %cst_36 {dimension_numbers = #tpu.dot_dimension_numbers<[1], [0], [0], [1], [0, 0, 1, 1], [], []>} : vector<224x16xbf16>, vector<16x8xbf16>, vector<224x8xf32> -> vector<224x8xf32>
    %57 = arith.addf %52, %56 : vector<224x8xf32>
    %cst_37 = arith.constant 0.000000e+00 : f32
    %58 = vector.broadcast %cst_37 : f32 to vector<224x8xf32>
    %59 = arith.maximumf %57, %58 : vector<224x8xf32>
    %60 = vector.shape_cast %59 : vector<224x8xf32> to vector<14x16x8xf32>
    %61 = vector.extract_strided_slice %60 {offsets = [0, 0, 0], sizes = [14, 14, 8], strides = [1, 1, 1]} : vector<14x16x8xf32> to vector<14x14x8xf32>
    %c0_38 = arith.constant 0 : index
    %c0_39 = arith.constant 0 : index
    %c0_40 = arith.constant 0 : index
    %c0_41 = arith.constant 0 : index
    %62 = vector.load %arg6[%c0_38, %c0_39, %c0_40, %c0_41] : memref<1x14x14x8xf32, #tpu.memory_space<vmem>>, vector<1x14x14x8xf32>
    %63 = vector.shape_cast %62 : vector<1x14x14x8xf32> to vector<14x14x8xf32>
    %64 = vector.shape_cast %61 : vector<14x14x8xf32> to vector<1x14x14x8xf32>
    tpu.vector_store %arg6[%c0_38, %c0_39, %c0_40, %c0_41], %64 {strides = array<i32>} : memref<1x14x14x8xf32, #tpu.memory_space<vmem>>, vector<1x14x14x8xf32>,
    return
  }
  func.func @transform_0(%arg0: i32) -> (i32, i32, i32) {
    %c0_i32 = arith.constant 0 : i32
    %c0_i32_0 = arith.constant 0 : i32
    %c0_i32_1 = arith.constant 0 : i32
    return %arg0, %c0_i32, %c0_i32_0 : i32, i32, i32
  }
  func.func @transform_1(%arg0: i32) -> (i32, i32) {
    %c0_i32 = arith.constant 0 : i32
    %c0_i32_0 = arith.constant 0 : i32
    %c0_i32_1 = arith.constant 0 : i32
    return %c0_i32, %c0_i32_0 : i32, i32
  }
  func.func @transform_2(%arg0: i32) -> (i32, i32) {
    %c0_i32 = arith.constant 0 : i32
    %c0_i32_0 = arith.constant 0 : i32
    %c0_i32_1 = arith.constant 0 : i32
    return %c0_i32, %c0_i32_0 : i32, i32
  }
  func.func @transform_3(%arg0: i32) -> (i32, i32, i32) {
    %c0_i32 = arith.constant 0 : i32
    %c0_i32_0 = arith.constant 0 : i32
    %c0_i32_1 = arith.constant 0 : i32
    %c0_i32_2 = arith.constant 0 : i32
    return %c0_i32, %c0_i32_0, %c0_i32_1 : i32, i32, i32
  }
  func.func @transform_4(%arg0: i32) -> (i32, i32) {
    %c0_i32 = arith.constant 0 : i32
    %c0_i32_0 = arith.constant 0 : i32
    %c0_i32_1 = arith.constant 0 : i32
    return %c0_i32, %c0_i32_0 : i32, i32
  }
  func.func @transform_5(%arg0: i32) -> (i32, i32, i32, i32) {
    %c0_i32 = arith.constant 0 : i32
    %c0_i32_0 = arith.constant 0 : i32
    %c0_i32_1 = arith.constant 0 : i32
    %c0_i32_2 = arith.constant 0 : i32
    return %arg0, %c0_i32, %c0_i32_0, %c0_i32_1 : i32, i32, i32, i32
  }
}

</mosaic_0001>

<llo_original>
// kernel: inception_base_route.1
$region0: #{inception_base_route.1}
  #allocation0 [shape = 'u32[]', space=smem, size = 0x4, offset = 0x4, fixed_abs, tag = 'smem constant byte address 0x4 - core index']
  #allocation1 [shape = 'u32[72,128]{1,0:T(1,128)}', space=vmem, size = 0x9000, scoped, tag = 'internal scratch']
  %s0 = inlined_call_operand.vmem [shape: bf16[2,288,4], index: 0, kind: input, shape index: {}]
  %s1 = inlined_call_operand.vmem [shape: bf16[4,16], index: 1, kind: input, shape index: {}]
  %s2 = inlined_call_operand.vmem [shape: f32[1,16], index: 2, kind: input, shape index: {}]
  %s3 = inlined_call_operand.vmem [shape: bf16[9,16,8], index: 3, kind: input, shape index: {}]
  %s4 = inlined_call_operand.vmem [shape: f32[1,8], index: 4, kind: input, shape index: {}]
  %s5 = inlined_call_operand.vmem [shape: f32[2,14,14,8], index: 5, kind: output, shape index: {}]
  %s6 = sld [smem:[#allocation0]]
  $region53: #{inception_base_route.1} parent=0
    _
  %s8 = ssub.s32 1, %s6
  %s9 = scalar_select 0, %s8, %s6
  loop: start=0, step=1, limit=4
  $region2: #{inception_base_route.1} parent=0 // loop_pre_header
    _
  $region3: #{inception_base_route.1} parent=0 // loop_header
    %s11 = sphi 0, %s15
    %p12 = scmp.ge.s32.totalorder %s11, 4
    %s21 = sphi 0, %s23
    %s24 = sphi 0, %s21
    %s25 = sphi 0, %s24
    %s41 = sphi 0, %s25
    %s45 = sphi 0, %s45
    %s47 = sphi 0, %s45
    %s48 = sphi 0, %s47
    %s62 = sphi 0, %s48
    %s66 = sphi 0, %s66
    %s68 = sphi 0, %s66
    %s69 = sphi 0, %s68
    %s83 = sphi 0, %s69
    %s87 = sphi 0, %s87
    %s89 = sphi 0, %s87
    %s90 = sphi 0, %s89
    %s104 = sphi 0, %s90
    %s108 = sphi 0, %s108
    %s110 = sphi 0, %s108
    %s111 = sphi 0, %s110
    %s125 = sphi 0, %s111
    %s131 = sphi 0, %s133
    %s134 = sphi 0, %s131
    %s135 = sphi 0, %s134
    %s151 = sphi 0, %s135
  $region4: #{inception_base_route.1} parent=0 // loop_header_branch
    %14 = sbr.rel (%p12) target = $region8
  $region5: #{inception_base_route.1} parent=0 // loop_body
    %s16 = ssub.s32 %s11, 1
    %s17 = ssub.s32 %s11, 2
    %s18 = sadd.s32 %s11, 1
    %s19 = ssub.s32 %s11, %s18
    %p20 = scmp.eq.s32.totalorder %s19, 0
    %s22 = sadd.s32 %s21, 1
    %s23 = scalar_select %p20, %s21, %s22
    %p26 = pneg %p20
    %p27 = scmp.eq.s32.totalorder %s11, 1
    %p28 = por %p26, %p27
    %p29 = scmp.ne.s32.totalorder %s21, %s24
    %p30 = scmp.eq.s32.totalorder %s11, 0
    %p31 = por %p29, %p30
    %p32 = scmp.ne.s32.totalorder %s21, %s24
    %p33 = scmp.eq.s32.totalorder %s16, 1
    %p34 = por %p32, %p33
    %p35 = scmp.ne.s32.totalorder %s24, %s25
    %p36 = scmp.eq.s32.totalorder %s16, 0
    %p37 = por %p35, %p36
    %p38 = scmp.ne.s32.totalorder %s24, %s25
    %p39 = scmp.eq.s32.totalorder %s17, 1
    %p40 = por %p38, %p39
    %p42 = scmp.ne.s32.totalorder %s25, %s41
    %p43 = scmp.eq.s32.totalorder %s17, 0
    %p44 = por %p42, %p43
    %s46 = sadd.s32 %s45, 1
    %p49 = scmp.eq.s32.totalorder %s11, 1
    %p50 = scmp.ne.s32.totalorder %s45, %s47
    %p51 = scmp.eq.s32.totalorder %s11, 0
    %p52 = por %p50, %p51
    %p53 = scmp.ne.s32.totalorder %s45, %s47
    %p54 = scmp.eq.s32.totalorder %s16, 1
    %p55 = por %p53, %p54
    %p56 = scmp.ne.s32.totalorder %s47, %s48
    %p57 = scmp.eq.s32.totalorder %s16, 0
    %p58 = por %p56, %p57
    %p59 = scmp.ne.s32.totalorder %s47, %s48
    %p60 = scmp.eq.s32.totalorder %s17, 1
    %p61 = por %p59, %p60
    %p63 = scmp.ne.s32.totalorder %s48, %s62
    %p64 = scmp.eq.s32.totalorder %s17, 0
    %p65 = por %p63, %p64
    %s67 = sadd.s32 %s66, 1
    %p70 = scmp.eq.s32.totalorder %s11, 1
    %p71 = scmp.ne.s32.totalorder %s66, %s68
    %p72 = scmp.eq.s32.totalorder %s11, 0
    %p73 = por %p71, %p72
    %p74 = scmp.ne.s32.totalorder %s66, %s68
    %p75 = scmp.eq.s32.totalorder %s16, 1
    %p76 = por %p74, %p75
    %p77 = scmp.ne.s32.totalorder %s68, %s69
    %p78 = scmp.eq.s32.totalorder %s16, 0
    %p79 = por %p77, %p78
    %p80 = scmp.ne.s32.totalorder %s68, %s69
    %p81 = scmp.eq.s32.totalorder %s17, 1
    %p82 = por %p80, %p81
    %p84 = scmp.ne.s32.totalorder %s69, %s83
    %p85 = scmp.eq.s32.totalorder %s17, 0
    %p86 = por %p84, %p85
    %s88 = sadd.s32 %s87, 1
    %p91 = scmp.eq.s32.totalorder %s11, 1
    %p92 = scmp.ne.s32.totalorder %s87, %s89
    %p93 = scmp.eq.s32.totalorder %s11, 0
    %p94 = por %p92, %p93
    %p95 = scmp.ne.s32.totalorder %s87, %s89
    %p96 = scmp.eq.s32.totalorder %s16, 1
    %p97 = por %p95, %p96
    %p98 = scmp.ne.s32.totalorder %s89, %s90
    %p99 = scmp.eq.s32.totalorder %s16, 0
    %p100 = por %p98, %p99
    %p101 = scmp.ne.s32.totalorder %s89, %s90
    %p102 = scmp.eq.s32.totalorder %s17, 1
    %p103 = por %p101, %p102
    %p105 = scmp.ne.s32.totalorder %s90, %s104
    %p106 = scmp.eq.s32.totalorder %s17, 0
    %p107 = por %p105, %p106
    %s109 = sadd.s32 %s108, 1
    %p112 = scmp.eq.s32.totalorder %s11, 1
    %p113 = scmp.ne.s32.totalorder %s108, %s110
    %p114 = scmp.eq.s32.totalorder %s11, 0
    %p115 = por %p113, %p114
    %p116 = scmp.ne.s32.totalorder %s108, %s110
    %p117 = scmp.eq.s32.totalorder %s16, 1
    %p118 = por %p116, %p117
    %p119 = scmp.ne.s32.totalorder %s110, %s111
    %p120 = scmp.eq.s32.totalorder %s16, 0
    %p121 = por %p119, %p120
    %p122 = scmp.ne.s32.totalorder %s110, %s111
    %p123 = scmp.eq.s32.totalorder %s17, 1
    %p124 = por %p122, %p123
    %p126 = scmp.ne.s32.totalorder %s111, %s125
    %p127 = scmp.eq.s32.totalorder %s17, 0
    %p128 = por %p126, %p127
    %s129 = ssub.s32 %s11, %s18
    %p130 = scmp.eq.s32.totalorder %s129, 0
    %s132 = sadd.s32 %s131, 1
    %s133 = scalar_select %p130, %s131, %s132
    %p136 = pneg %p130
    %p137 = scmp.eq.s32.totalorder %s11, 1
    %p138 = por %p136, %p137
    %p139 = scmp.ne.s32.totalorder %s131, %s134
    %p140 = scmp.eq.s32.totalorder %s11, 0
    %p141 = por %p139, %p140
    %p142 = scmp.ne.s32.totalorder %s131, %s134
    %p143 = scmp.eq.s32.totalorder %s16, 1
    %p144 = por %p142, %p143
    %p145 = scmp.ne.s32.totalorder %s134, %s135
    %p146 = scmp.eq.s32.totalorder %s16, 0
    %p147 = por %p145, %p146
    %p148 = scmp.ne.s32.totalorder %s134, %s135
    %p149 = scmp.eq.s32.totalorder %s17, 1
    %p150 = por %p148, %p149
    %p152 = scmp.ne.s32.totalorder %s135, %s151
    %p153 = scmp.eq.s32.totalorder %s17, 0
    %p154 = por %p152, %p153
    %p155 = scmp.le.s32.totalorder 1, %s11
    %p156 = scmp.lt.s32.totalorder %s11, 3
    %p157 = pnand %p155, %p156
    %p158 = pneg %p157
    // Predicated region
    $region9: #{inception_base_route.1} parent=5 // pred_check
      _
    $region10: #{inception_base_route.1} parent=5 // pred_check_branch
      %160 = sbr.rel (%p157) target = $region12
    $region11: #{inception_base_route.1} parent=5 // pred_region
      %s161 = ssub.s32 %s11, 1
      // Predicated region
      $region13: #{inception_base_route.1} parent=11 // pred_check
        %p162 = pneg %p58
      $region14: #{inception_base_route.1} parent=11 // pred_check_branch
        %164 = sbr.rel (%p162) target = $region16
      $region15: #{inception_base_route.1} parent=11 // pred_region
        _
      $region16: #{inception_base_route.1} parent=11 // pred_fallthru
        _
      // Predicated region
      $region17: #{inception_base_route.1} parent=11 // pred_check
        %p165 = pneg %p79
      $region18: #{inception_base_route.1} parent=11 // pred_check_branch
        %167 = sbr.rel (%p165) target = $region20
      $region19: #{inception_base_route.1} parent=11 // pred_region
        _
      $region20: #{inception_base_route.1} parent=11 // pred_fallthru
        _
      // Predicated region
      $region21: #{inception_base_route.1} parent=11 // pred_check
        %p168 = pneg %p100
      $region22: #{inception_base_route.1} parent=11 // pred_check_branch
        %170 = sbr.rel (%p168) target = $region24
      $region23: #{inception_base_route.1} parent=11 // pred_region
        _
      $region24: #{inception_base_route.1} parent=11 // pred_fallthru
        _
      // Predicated region
      $region25: #{inception_base_route.1} parent=11 // pred_check
        %p171 = pneg %p121
      $region26: #{inception_base_route.1} parent=11 // pred_check_branch
        %173 = sbr.rel (%p171) target = $region28
      $region27: #{inception_base_route.1} parent=11 // pred_region
        _
      $region28: #{inception_base_route.1} parent=11 // pred_fallthru
        _
    $region12: #{inception_base_route.1} parent=5 // pred_fallthru
      _
    %p174 = scmp.lt.s32.totalorder %s11, 2
    // Predicated region
    $region29: #{inception_base_route.1} parent=5 // pred_check
      %p175 = pneg %p174
    $region30: #{inception_base_route.1} parent=5 // pred_check_branch
      %177 = sbr.rel (%p175) target = $region32
    $region31: #{inception_base_route.1} parent=5 // pred_region
      // Predicated region
      $region33: #{inception_base_route.1} parent=31 // pred_check
        %p178 = pneg %p31
      $region34: #{inception_base_route.1} parent=31 // pred_check_branch
        %180 = sbr.rel (%p178) target = $region36
      $region35: #{inception_base_route.1} parent=31 // pred_region
        %p181 = scmp.lt.s32.totalorder %s11, 1
        %s182 = scalar_select %p181, %s11, 1
        %s183 = smul.addr %s182, 36
        %s184 = smul.addr %s183, 4
        %s185 = scalar_lea.vmem %s0, %s184
      $region36: #{inception_base_route.1} parent=31 // pred_fallthru
        _
    $region32: #{inception_base_route.1} parent=5 // pred_fallthru
      _
    %p186 = scmp.le.s32.totalorder 1, %s11
    %p187 = scmp.lt.s32.totalorder %s11, 3
    %p188 = pnand %p186, %p187
    %p189 = pneg %p188
    // Predicated region
    $region37: #{inception_base_route.1} parent=5 // pred_check
      _
    $region38: #{inception_base_route.1} parent=5 // pred_check_branch
      %191 = sbr.rel (%p188) target = $region40
    $region39: #{inception_base_route.1} parent=5 // pred_region
      %s192 = ssub.s32 %s11, 1
      %p193 = scmp.lt.s32.totalorder %s16, 1
      %s194 = scalar_select %p193, %s16, 1
      %s195 = smul.addr %s194, 36
      %s196 = smul.addr %s195, 4
      %s197 = scalar_lea.vmem %s0, %s196
      %p198 = pneg %p37
      %p199 = pneg %p34
      %p200 = pneg %p58
      %p201 = pneg %p55
      %p202 = pneg %p79
      %p203 = pneg %p76
      %p204 = pneg %p100
      %p205 = pneg %p97
      %p206 = pneg %p121
      %p207 = pneg %p118
      %p208 = pneg %p147
      %p209 = pneg %p144
      %p210 = scmp.lt.s32.totalorder %s16, 1
      %s211 = scalar_select %p210, %s16, 1
      %s212 = smul.addr %s211, 28
      %s213 = smul.addr %s212, 8
      %s214 = scalar_lea.vmem %s5, %s213
      %p215 = scmp.lt.s32.totalorder %s16, 1
      %s216 = scalar_select %p215, %s16, 1
      %s217 = smul.addr %s216, 36
      %s218 = smul.addr %s217, 4
      %s219 = scalar_lea.vmem %s0, %s218
      %p220 = scmp.lt.s32.totalorder %s16, 1
      %s221 = scalar_select %p220, %s16, 1
      %s222 = smul.addr %s221, 28
      %s223 = smul.addr %s222, 8
      %s224 = scalar_lea.vmem %s5, %s223
      %v226 = vld [vmem:[%s219] sm:$0xf]
      %v227 = vld [vmem:[%s219 + $0x4] sm:$0xf]
      %v228 = vld [vmem:[%s219 + $0x8] sm:$0xf]
      %v229 = vld [vmem:[%s219 + $0xc] sm:$0xf]
      %v230 = vld [vmem:[%s219 + $0x10] sm:$0xf]
      %v231 = vld [vmem:[%s219 + $0x14] sm:$0xf]
      %v232 = vld [vmem:[%s219 + $0x18] sm:$0xf]
      %v233 = vld [vmem:[%s219 + $0x1c] sm:$0xf]
      %v234 = vld [vmem:[%s219 + $0x20] sm:$0xf]
      %v235 = vld [vmem:[%s219 + $0x24] sm:$0xf]
      %v236 = vld [vmem:[%s219 + $0x28] sm:$0xf]
      %v237 = vld [vmem:[%s219 + $0x2c] sm:$0xf]
      %v238 = vld [vmem:[%s219 + $0x30] sm:$0xf]
      %v239 = vld [vmem:[%s219 + $0x34] sm:$0xf]
      %v240 = vld [vmem:[%s219 + $0x38] sm:$0xf]
      %v241 = vld [vmem:[%s219 + $0x3c] sm:$0xf]
      %v242 = vld [vmem:[%s219 + $0x40] sm:$0xf]
      %v243 = vld [vmem:[%s219 + $0x44] sm:$0xf]
      %v244 = vld [vmem:[%s219 + $0x48] sm:$0xf]
      %v245 = vld [vmem:[%s219 + $0x4c] sm:$0xf]
      %v246 = vld [vmem:[%s219 + $0x50] sm:$0xf]
      %v247 = vld [vmem:[%s219 + $0x54] sm:$0xf]
      %v248 = vld [vmem:[%s219 + $0x58] sm:$0xf]
      %v249 = vld [vmem:[%s219 + $0x5c] sm:$0xf]
      %v250 = vld [vmem:[%s219 + $0x60] sm:$0xf]
      %v251 = vld [vmem:[%s219 + $0x64] sm:$0xf]
      %v252 = vld [vmem:[%s219 + $0x68] sm:$0xf]
      %v253 = vld [vmem:[%s219 + $0x6c] sm:$0xf]
      %v254 = vld [vmem:[%s219 + $0x70] sm:$0xf]
      %v255 = vld [vmem:[%s219 + $0x74] sm:$0xf]
      %v256 = vld [vmem:[%s219 + $0x78] sm:$0xf]
      %v257 = vld [vmem:[%s219 + $0x7c] sm:$0xf]
      %v258 = vld [vmem:[%s219 + $0x80] sm:$0xf]
      %v259 = vld [vmem:[%s219 + $0x84] sm:$0xf]
      %v260 = vld [vmem:[%s219 + $0x88] sm:$0xf]
      %v261 = vld [vmem:[%s219 + $0x8c] sm:$0xf]
      %v262 = vld [vmem:[%s1] sm:$0x3]
      %v263 = vld [vmem:[%s2] sm:$0x1]
      %v265 = vperm.slane %v263, 0
      %v303 = vunpack.c.l.b16 %v226
      %v304 = vunpack.c.l.b16 %v227
      %v305 = vunpack.c.l.b16 %v228
      %v306 = vunpack.c.l.b16 %v229
      %v307 = vunpack.c.l.b16 %v230
      %v308 = vunpack.c.l.b16 %v231
      %v309 = vunpack.c.l.b16 %v232
      %v310 = vunpack.c.l.b16 %v233
      %v311 = vunpack.c.l.b16 %v234
      %v312 = vunpack.c.l.b16 %v235
      %v313 = vunpack.c.l.b16 %v236
      %v314 = vunpack.c.l.b16 %v237
      %v315 = vunpack.c.l.b16 %v238
      %v316 = vunpack.c.l.b16 %v239
      %v317 = vunpack.c.l.b16 %v240
      %v318 = vunpack.c.l.b16 %v241
      %v319 = vunpack.c.l.b16 %v242
      %v320 = vunpack.c.l.b16 %v243
      %v321 = vunpack.c.l.b16 %v244
      %v322 = vunpack.c.l.b16 %v245
      %v323 = vunpack.c.l.b16 %v246
      %v324 = vunpack.c.l.b16 %v247
      %v325 = vunpack.c.l.b16 %v248
      %v326 = vunpack.c.l.b16 %v249
      %v327 = vunpack.c.l.b16 %v250
      %v328 = vunpack.c.l.b16 %v251
      %v329 = vunpack.c.l.b16 %v252
      %v330 = vunpack.c.l.b16 %v253
      %v331 = vunpack.c.l.b16 %v254
      %v332 = vunpack.c.l.b16 %v255
      %v333 = vunpack.c.l.b16 %v256
      %v334 = vunpack.c.l.b16 %v257
      %v335 = vunpack.c.l.b16 %v258
      %v336 = vunpack.c.l.b16 %v259
      %v337 = vunpack.c.l.b16 %v260
      %v338 = vunpack.c.l.b16 %v261
      %v339 = vpack.c.b16 %v304, %v303
      %v340 = vpack.c.b16 %v306, %v305
      %v341 = vpack.c.b16 %v308, %v307
      %v342 = vpack.c.b16 %v310, %v309
      %v343 = vpack.c.b16 %v312, %v311
      %v344 = vpack.c.b16 %v314, %v313
      %v345 = vpack.c.b16 %v316, %v315
      %v346 = vpack.c.b16 %v318, %v317
      %v347 = vpack.c.b16 %v320, %v319
      %v348 = vpack.c.b16 %v322, %v321
      %v349 = vpack.c.b16 %v324, %v323
      %v350 = vpack.c.b16 %v326, %v325
      %v351 = vpack.c.b16 %v328, %v327
      %v352 = vpack.c.b16 %v330, %v329
      %v353 = vpack.c.b16 %v332, %v331
      %v354 = vpack.c.b16 %v334, %v333
      %v355 = vpack.c.b16 %v336, %v335
      %v356 = vpack.c.b16 %v338, %v337
      %vm357 = vcmask 31744
      %v359 = vsel %vm357, %v339, 0
      %v362 = vsel %vm357, %v340, 0
      %v365 = vsel %vm357, %v341, 0
      %v368 = vsel %vm357, %v342, 0
      %v371 = vsel %vm357, %v343, 0
      %v374 = vsel %vm357, %v344, 0
      %v377 = vsel %vm357, %v345, 0
      %v380 = vsel %vm357, %v346, 0
      %v383 = vsel %vm357, %v347, 0
      %v386 = vsel %vm357, %v348, 0
      %v389 = vsel %vm357, %v349, 0
      %v392 = vsel %vm357, %v350, 0
      %v395 = vsel %vm357, %v351, 0
      %v398 = vsel %vm357, %v352, 0
      %v401 = vsel %vm357, %v353, 0
      %v404 = vsel %vm357, %v354, 0
      %v407 = vsel %vm357, %v355, 0
      %v410 = vsel %vm357, %v356, 0
      %vm412 = vcmask 1041408
      %v414 = vsel %vm412, %v262, 0
      %416 = vmatpush.bf16.msra.mxu0 0
      %417 = vmatpush.bf16.msra.mxu0 0
      %418 = vmatpush.bf16.msra.mxu0 0
      %419 = vmatpush.bf16.msra.mxu0 0
      %420 = vmatpush.bf16.msra.mxu0 0
      %421 = vmatpush.bf16.msra.mxu0 0
      %422 = vmatpush.bf16.msra.mxu0 0
      %423 = vmatpush.bf16.msra.mxu0 %v414
      %424 = vmatmul.bf16.gmra.mxu0 %v359
      %v425 = vpop.f32.mrf.mxu0
      %v426 = vadd.f32 %v265, %v425
      %v427 = vpop.f32.mrf.mxu0
      %v428 = vadd.f32 %v265, %v427
      %429 = vmatmul.bf16.gmra.mxu0 %v362
      %v430 = vpop.f32.mrf.mxu0
      %v431 = vadd.f32 %v265, %v430
      %v432 = vpop.f32.mrf.mxu0
      %v433 = vadd.f32 %v265, %v432
      %434 = vmatmul.bf16.gmra.mxu0 %v365
      %v435 = vpop.f32.mrf.mxu0
      %v436 = vadd.f32 %v265, %v435
      %v437 = vpop.f32.mrf.mxu0
      %v438 = vadd.f32 %v265, %v437
      %439 = vmatmul.bf16.gmra.mxu0 %v368
      %v440 = vpop.f32.mrf.mxu0
      %v441 = vadd.f32 %v265, %v440
      %v442 = vpop.f32.mrf.mxu0
      %v443 = vadd.f32 %v265, %v442
      %444 = vmatmul.bf16.gmra.mxu0 %v371
      %v445 = vpop.f32.mrf.mxu0
      %v446 = vadd.f32 %v265, %v445
      %v447 = vpop.f32.mrf.mxu0
      %v448 = vadd.f32 %v265, %v447
      %449 = vmatmul.bf16.gmra.mxu0 %v374
      %v450 = vpop.f32.mrf.mxu0
      %v451 = vadd.f32 %v265, %v450
      %v452 = vpop.f32.mrf.mxu0
      %v453 = vadd.f32 %v265, %v452
      %454 = vmatmul.bf16.gmra.mxu0 %v377
      %v455 = vpop.f32.mrf.mxu0
      %v456 = vadd.f32 %v265, %v455
      %v457 = vpop.f32.mrf.mxu0
      %v458 = vadd.f32 %v265, %v457
      %459 = vmatmul.bf16.gmra.mxu0 %v380
      %v460 = vpop.f32.mrf.mxu0
      %v461 = vadd.f32 %v265, %v460
      %v462 = vpop.f32.mrf.mxu0
      %v463 = vadd.f32 %v265, %v462
      %464 = vmatmul.bf16.gmra.mxu0 %v383
      %v465 = vpop.f32.mrf.mxu0
      %v466 = vadd.f32 %v265, %v465
      %v467 = vpop.f32.mrf.mxu0
      %v468 = vadd.f32 %v265, %v467
      %469 = vmatmul.bf16.gmra.mxu0 %v386
      %v470 = vpop.f32.mrf.mxu0
      %v471 = vadd.f32 %v265, %v470
      %v472 = vpop.f32.mrf.mxu0
      %v473 = vadd.f32 %v265, %v472
      %474 = vmatmul.bf16.gmra.mxu0 %v389
      %v475 = vpop.f32.mrf.mxu0
      %v476 = vadd.f32 %v265, %v475
      %v477 = vpop.f32.mrf.mxu0
      %v478 = vadd.f32 %v265, %v477
      %479 = vmatmul.bf16.gmra.mxu0 %v392
      %v480 = vpop.f32.mrf.mxu0
      %v481 = vadd.f32 %v265, %v480
      %v482 = vpop.f32.mrf.mxu0
      %v483 = vadd.f32 %v265, %v482
      %484 = vmatmul.bf16.gmra.mxu0 %v395
      %v485 = vpop.f32.mrf.mxu0
      %v486 = vadd.f32 %v265, %v485
      %v487 = vpop.f32.mrf.mxu0
      %v488 = vadd.f32 %v265, %v487
      %489 = vmatmul.bf16.gmra.mxu0 %v398
      %v490 = vpop.f32.mrf.mxu0
      %v491 = vadd.f32 %v265, %v490
      %v492 = vpop.f32.mrf.mxu0
      %v493 = vadd.f32 %v265, %v492
      %494 = vmatmul.bf16.gmra.mxu0 %v401
      %v495 = vpop.f32.mrf.mxu0
      %v496 = vadd.f32 %v265, %v495
      %v497 = vpop.f32.mrf.mxu0
      %v498 = vadd.f32 %v265, %v497
      %499 = vmatmul.bf16.gmra.mxu0 %v404
      %v500 = vpop.f32.mrf.mxu0
      %v501 = vadd.f32 %v265, %v500
      %v502 = vpop.f32.mrf.mxu0
      %v503 = vadd.f32 %v265, %v502
      %504 = vmatmul.bf16.gmra.mxu0 %v407
      %v505 = vpop.f32.mrf.mxu0
      %v506 = vadd.f32 %v265, %v505
      %v507 = vpop.f32.mrf.mxu0
      %508 = vmatmul.bf16.gmra.mxu0 %v410
      %v509 = vpop.f32.mrf.mxu0
      %v510 = vpop.f32.mrf.mxu0
      %511 = vdwg.mxu0
      %v512 = vmax.f32 %v426, 0.0
      %v513 = vmax.f32 %v428, 0.0
      %v514 = vmax.f32 %v431, 0.0
      %v515 = vmax.f32 %v433, 0.0
      %v516 = vmax.f32 %v436, 0.0
      %v517 = vmax.f32 %v438, 0.0
      %v518 = vmax.f32 %v441, 0.0
      %v519 = vmax.f32 %v443, 0.0
      %v520 = vmax.f32 %v446, 0.0
      %v521 = vmax.f32 %v448, 0.0
      %v522 = vmax.f32 %v451, 0.0
      %v523 = vmax.f32 %v453, 0.0
      %v524 = vmax.f32 %v456, 0.0
      %v525 = vmax.f32 %v458, 0.0
      %v526 = vmax.f32 %v461, 0.0
      %v527 = vmax.f32 %v463, 0.0
      %v528 = vmax.f32 %v466, 0.0
      %v529 = vmax.f32 %v468, 0.0
      %v530 = vmax.f32 %v471, 0.0
      %v531 = vmax.f32 %v473, 0.0
      %v532 = vmax.f32 %v476, 0.0
      %v533 = vmax.f32 %v478, 0.0
      %v534 = vmax.f32 %v481, 0.0
      %v535 = vmax.f32 %v483, 0.0
      %v536 = vmax.f32 %v486, 0.0
      %v537 = vmax.f32 %v488, 0.0
      %v538 = vmax.f32 %v491, 0.0
      %v539 = vmax.f32 %v493, 0.0
      %v540 = vmax.f32 %v496, 0.0
      %v541 = vmax.f32 %v498, 0.0
      %v542 = vmax.f32 %v501, 0.0
      %v543 = vmax.f32 %v503, 0.0
      %v544 = vmax.f32 %v506, 0.0
      %v545 = vpack.c.bf16 %v512, %v512
      %v546 = vpack.c.bf16 %v513, %v513
      %v547 = vpack.c.bf16 %v514, %v514
      %v548 = vpack.c.bf16 %v515, %v515
      %v549 = vpack.c.bf16 %v516, %v516
      %v550 = vpack.c.bf16 %v517, %v517
      %v551 = vpack.c.bf16 %v518, %v518
      %v552 = vpack.c.bf16 %v519, %v519
      %v553 = vpack.c.bf16 %v520, %v520
      %v554 = vpack.c.bf16 %v521, %v521
      %v555 = vpack.c.bf16 %v522, %v522
      %v556 = vpack.c.bf16 %v523, %v523
      %v557 = vpack.c.bf16 %v524, %v524
      %v558 = vpack.c.bf16 %v525, %v525
      %v559 = vpack.c.bf16 %v526, %v526
      %v560 = vpack.c.bf16 %v527, %v527
      %v561 = vpack.c.bf16 %v528, %v528
      %v562 = vpack.c.bf16 %v529, %v529
      %v563 = vpack.c.bf16 %v530, %v530
      %v564 = vpack.c.bf16 %v531, %v531
      %v565 = vpack.c.bf16 %v532, %v532
      %v566 = vpack.c.bf16 %v533, %v533
      %v567 = vpack.c.bf16 %v534, %v534
      %v568 = vpack.c.bf16 %v535, %v535
      %v569 = vpack.c.bf16 %v536, %v536
      %v570 = vpack.c.bf16 %v537, %v537
      %v571 = vpack.c.bf16 %v538, %v538
      %v572 = vpack.c.bf16 %v539, %v539
      %v573 = vpack.c.bf16 %v540, %v540
      %v574 = vpack.c.bf16 %v541, %v541
      %v575 = vpack.c.bf16 %v542, %v542
      %v576 = vpack.c.bf16 %v543, %v543
      %v577 = vpack.c.bf16 %v544, %v544
      %v578 = vld [vmem:[%s4] sm:$0x1]
      %v580 = vperm.slane %v578, 0
      %v582 = vld [vmem:[%s3] sm:$0xf]
      %v583 = vld [vmem:[%s3 + $0x4] sm:$0xf]
      %v612 = vunpack.c.l.b16 %v545
      %v613 = vunpack.c.l.b16 %v546
      %v614 = vunpack.c.l.b16 %v547
      %v615 = vunpack.c.l.b16 %v548
      %v616 = vunpack.c.l.b16 %v549
      %v617 = vunpack.c.l.b16 %v550
      %v618 = vunpack.c.l.b16 %v551
      %v619 = vunpack.c.l.b16 %v552
      %v620 = vunpack.c.l.b16 %v553
      %v621 = vunpack.c.l.b16 %v554
      %v622 = vunpack.c.l.b16 %v555
      %v623 = vunpack.c.l.b16 %v556
      %v624 = vunpack.c.l.b16 %v557
      %v625 = vunpack.c.l.b16 %v558
      %v626 = vunpack.c.l.b16 %v559
      %v627 = vunpack.c.l.b16 %v560
      %v628 = vunpack.c.l.b16 %v561
      %v629 = vunpack.c.l.b16 %v562
      %v630 = vunpack.c.l.b16 %v563
      %v631 = vunpack.c.l.b16 %v564
      %v632 = vunpack.c.l.b16 %v565
      %v633 = vunpack.c.l.b16 %v566
      %v634 = vunpack.c.l.b16 %v567
      %v635 = vunpack.c.l.b16 %v568
      %v636 = vunpack.c.l.b16 %v569
      %v637 = vunpack.c.l.b16 %v570
      %v638 = vunpack.c.l.b16 %v571
      %v639 = vunpack.c.l.b16 %v572
      %v640 = vpack.c.b16 %v613, %v612
      %v641 = vpack.c.b16 %v615, %v614
      %v642 = vpack.c.b16 %v617, %v616
      %v643 = vpack.c.b16 %v619, %v618
      %v644 = vpack.c.b16 %v621, %v620
      %v645 = vpack.c.b16 %v623, %v622
      %v646 = vpack.c.b16 %v625, %v624
      %v647 = vpack.c.b16 %v627, %v626
      %v648 = vpack.c.b16 %v629, %v628
      %v649 = vpack.c.b16 %v631, %v630
      %v650 = vpack.c.b16 %v633, %v632
      %v651 = vpack.c.b16 %v635, %v634
      %v652 = vpack.c.b16 %v637, %v636
      %v653 = vpack.c.b16 %v639, %v638
      %v656 = vunpack.c.l.b16 %v582
      %v657 = vunpack.c.l.b16 %v583
      %v658 = vpack.c.b16 %v657, %v656
      %vm660 = vcmask 130048
      %v662 = vsel %vm660, %v640, 0
      %v665 = vsel %vm660, %v641, 0
      %v668 = vsel %vm660, %v642, 0
      %v671 = vsel %vm660, %v643, 0
      %v674 = vsel %vm660, %v644, 0
      %v677 = vsel %vm660, %v645, 0
      %v680 = vsel %vm660, %v646, 0
      %v683 = vsel %vm660, %v647, 0
      %v686 = vsel %vm660, %v648, 0
      %v689 = vsel %vm660, %v649, 0
      %v692 = vsel %vm660, %v650, 0
      %v695 = vsel %vm660, %v651, 0
      %v698 = vsel %vm660, %v652, 0
      %v701 = vsel %vm660, %v653, 0
      %703 = vmatpush.bf16.msra.mxu0 0
      %704 = vmatpush.bf16.msra.mxu0 0
      %705 = vmatpush.bf16.msra.mxu0 0
      %706 = vmatpush.bf16.msra.mxu0 0
      %707 = vmatpush.bf16.msra.mxu0 0
      %708 = vmatpush.bf16.msra.mxu0 0
      %709 = vmatpush.bf16.msra.mxu0 0
      %710 = vmatpush.bf16.msra.mxu0 %v658
      %711 = vmatmul.bf16.gmra.mxu0 %v662
      %v712 = vpop.f32.mrf.mxu0
      %v713 = vadd.f32 0.0, %v712
      %v714 = vpop.f32.mrf.mxu0
      %v715 = vadd.f32 0.0, %v714
      %716 = vmatmul.bf16.gmra.mxu0 %v665
      %v717 = vpop.f32.mrf.mxu0
      %v718 = vadd.f32 0.0, %v717
      %v719 = vpop.f32.mrf.mxu0
      %v720 = vadd.f32 0.0, %v719
      %721 = vmatmul.bf16.gmra.mxu0 %v668
      %v722 = vpop.f32.mrf.mxu0
      %v723 = vadd.f32 0.0, %v722
      %v724 = vpop.f32.mrf.mxu0
      %v725 = vadd.f32 0.0, %v724
      %726 = vmatmul.bf16.gmra.mxu0 %v671
      %v727 = vpop.f32.mrf.mxu0
      %v728 = vadd.f32 0.0, %v727
      %v729 = vpop.f32.mrf.mxu0
      %v730 = vadd.f32 0.0, %v729
      %731 = vmatmul.bf16.gmra.mxu0 %v674
      %v732 = vpop.f32.mrf.mxu0
      %v733 = vadd.f32 0.0, %v732
      %v734 = vpop.f32.mrf.mxu0
      %v735 = vadd.f32 0.0, %v734
      %736 = vmatmul.bf16.gmra.mxu0 %v677
      %v737 = vpop.f32.mrf.mxu0
      %v738 = vadd.f32 0.0, %v737
      %v739 = vpop.f32.mrf.mxu0
      %v740 = vadd.f32 0.0, %v739
      %741 = vmatmul.bf16.gmra.mxu0 %v680
      %v742 = vpop.f32.mrf.mxu0
      %v743 = vadd.f32 0.0, %v742
      %v744 = vpop.f32.mrf.mxu0
      %v745 = vadd.f32 0.0, %v744
      %746 = vmatmul.bf16.gmra.mxu0 %v683
      %v747 = vpop.f32.mrf.mxu0
      %v748 = vadd.f32 0.0, %v747
      %v749 = vpop.f32.mrf.mxu0
      %v750 = vadd.f32 0.0, %v749
      %751 = vmatmul.bf16.gmra.mxu0 %v686
      %v752 = vpop.f32.mrf.mxu0
      %v753 = vadd.f32 0.0, %v752
      %v754 = vpop.f32.mrf.mxu0
      %v755 = vadd.f32 0.0, %v754
      %756 = vmatmul.bf16.gmra.mxu0 %v689
      %v757 = vpop.f32.mrf.mxu0
      %v758 = vadd.f32 0.0, %v757
      %v759 = vpop.f32.mrf.mxu0
      %v760 = vadd.f32 0.0, %v759
      %761 = vmatmul.bf16.gmra.mxu0 %v692
      %v762 = vpop.f32.mrf.mxu0
      %v763 = vadd.f32 0.0, %v762
      %v764 = vpop.f32.mrf.mxu0
      %v765 = vadd.f32 0.0, %v764
      %766 = vmatmul.bf16.gmra.mxu0 %v695
      %v767 = vpop.f32.mrf.mxu0
      %v768 = vadd.f32 0.0, %v767
      %v769 = vpop.f32.mrf.mxu0
      %v770 = vadd.f32 0.0, %v769
      %771 = vmatmul.bf16.gmra.mxu0 %v698
      %v772 = vpop.f32.mrf.mxu0
      %v773 = vadd.f32 0.0, %v772
      %v774 = vpop.f32.mrf.mxu0
      %v775 = vadd.f32 0.0, %v774
      %776 = vmatmul.bf16.gmra.mxu0 %v701
      %v777 = vpop.f32.mrf.mxu0
      %v778 = vadd.f32 0.0, %v777
      %v779 = vpop.f32.mrf.mxu0
      %v780 = vadd.f32 0.0, %v779
      %781 = vdwg.mxu0
      %v782 = vadd.f32 %v580, %v713
      %v783 = vadd.f32 %v580, %v715
      %v784 = vadd.f32 %v580, %v718
      %v785 = vadd.f32 %v580, %v720
      %v786 = vadd.f32 %v580, %v723
      %v787 = vadd.f32 %v580, %v725
      %v788 = vadd.f32 %v580, %v728
      %v789 = vadd.f32 %v580, %v730
      %v790 = vadd.f32 %v580, %v733
      %v791 = vadd.f32 %v580, %v735
      %v792 = vadd.f32 %v580, %v738
      %v793 = vadd.f32 %v580, %v740
      %v794 = vadd.f32 %v580, %v743
      %v795 = vadd.f32 %v580, %v745
      %v796 = vadd.f32 %v580, %v748
      %v797 = vadd.f32 %v580, %v750
      %v798 = vadd.f32 %v580, %v753
      %v799 = vadd.f32 %v580, %v755
      %v800 = vadd.f32 %v580, %v758
      %v801 = vadd.f32 %v580, %v760
      %v802 = vadd.f32 %v580, %v763
      %v803 = vadd.f32 %v580, %v765
      %v804 = vadd.f32 %v580, %v768
      %v805 = vadd.f32 %v580, %v770
      %v806 = vadd.f32 %v580, %v773
      %v807 = vadd.f32 %v580, %v775
      %v808 = vadd.f32 %v580, %v778
      %v809 = vadd.f32 %v580, %v780
      %s810 = scalar_lea.vmem %s3, 8
      %v811 = vld [vmem:[%s810] sm:$0xf]
      %v812 = vld [vmem:[%s810 + $0x4] sm:$0xf]
      %v814 = vunpack.c.l.b16 %v573
      %v815 = vpack.c.b16 %v814, %v814
      %vm816 = vsmask.f32 7424
      %v817 = vshrl.u32 %v640, 16
      %v819 = vshll.u32 %v640, 16
      %v821 = vrot.slane %v819, 1
      %v822 = vor.u32 %v817, %v821
      %v823 = vshll.u32 %v641, 16
      %v825 = vrot.slane %v823, 1
      %v826 = vsel %vm816, %v822, %v825
      %v827 = vshrl.u32 %v641, 16
      %v829 = vor.u32 %v827, %v825
      %v830 = vshll.u32 %v642, 16
      %v832 = vrot.slane %v830, 1
      %v833 = vsel %vm816, %v829, %v832
      %v834 = vshrl.u32 %v642, 16
      %v836 = vor.u32 %v834, %v832
      %v837 = vshll.u32 %v643, 16
      %v839 = vrot.slane %v837, 1
      %v840 = vsel %vm816, %v836, %v839
      %v841 = vshrl.u32 %v643, 16
      %v843 = vor.u32 %v841, %v839
      %v844 = vshll.u32 %v644, 16
      %v846 = vrot.slane %v844, 1
      %v847 = vsel %vm816, %v843, %v846
      %v848 = vshrl.u32 %v644, 16
      %v850 = vor.u32 %v848, %v846
      %v851 = vshll.u32 %v645, 16
      %v853 = vrot.slane %v851, 1
      %v854 = vsel %vm816, %v850, %v853
      %v855 = vshrl.u32 %v645, 16
      %v857 = vor.u32 %v855, %v853
      %v858 = vshll.u32 %v646, 16
      %v860 = vrot.slane %v858, 1
      %v861 = vsel %vm816, %v857, %v860
      %v862 = vshrl.u32 %v646, 16
      %v864 = vor.u32 %v862, %v860
      %v865 = vshll.u32 %v647, 16
      %v867 = vrot.slane %v865, 1
      %v868 = vsel %vm816, %v864, %v867
      %v869 = vshrl.u32 %v647, 16
      %v871 = vor.u32 %v869, %v867
      %v872 = vshll.u32 %v648, 16
      %v874 = vrot.slane %v872, 1
      %v875 = vsel %vm816, %v871, %v874
      %v876 = vshrl.u32 %v648, 16
      %v878 = vor.u32 %v876, %v874
      %v879 = vshll.u32 %v649, 16
      %v881 = vrot.slane %v879, 1
      %v882 = vsel %vm816, %v878, %v881
      %v883 = vshrl.u32 %v649, 16
      %v885 = vor.u32 %v883, %v881
      %v886 = vshll.u32 %v650, 16
      %v888 = vrot.slane %v886, 1
      %v889 = vsel %vm816, %v885, %v888
      %v890 = vshrl.u32 %v650, 16
      %v892 = vor.u32 %v890, %v888
      %v893 = vshll.u32 %v651, 16
      %v895 = vrot.slane %v893, 1
      %v896 = vsel %vm816, %v892, %v895
      %v897 = vshrl.u32 %v651, 16
      %v899 = vor.u32 %v897, %v895
      %v900 = vshll.u32 %v652, 16
      %v902 = vrot.slane %v900, 1
      %v903 = vsel %vm816, %v899, %v902
      %v904 = vshrl.u32 %v652, 16
      %v906 = vor.u32 %v904, %v902
      %v907 = vshll.u32 %v653, 16
      %v909 = vrot.slane %v907, 1
      %v910 = vsel %vm816, %v906, %v909
      %v911 = vshrl.u32 %v653, 16
      %v913 = vor.u32 %v911, %v909
      %v915 = vshll.u32 %v815, 16
      %v917 = vrot.slane %v915, 1
      %v918 = vsel %vm816, %v913, %v917
      %v921 = vunpack.c.l.b16 %v811
      %v922 = vunpack.c.l.b16 %v812
      %v923 = vpack.c.b16 %v922, %v921
      %v926 = vsel %vm660, %v826, 0
      %v929 = vsel %vm660, %v833, 0
      %v932 = vsel %vm660, %v840, 0
      %v935 = vsel %vm660, %v847, 0
      %v938 = vsel %vm660, %v854, 0
      %v941 = vsel %vm660, %v861, 0
      %v944 = vsel %vm660, %v868, 0
      %v947 = vsel %vm660, %v875, 0
      %v950 = vsel %vm660, %v882, 0
      %v953 = vsel %vm660, %v889, 0
      %v956 = vsel %vm660, %v896, 0
      %v959 = vsel %vm660, %v903, 0
      %v962 = vsel %vm660, %v910, 0
      %v965 = vsel %vm660, %v918, 0
      %967 = vmatpush.bf16.msra.mxu0 0
      %968 = vmatpush.bf16.msra.mxu0 0
      %969 = vmatpush.bf16.msra.mxu0 0
      %970 = vmatpush.bf16.msra.mxu0 0
      %971 = vmatpush.bf16.msra.mxu0 0
      %972 = vmatpush.bf16.msra.mxu0 0
      %973 = vmatpush.bf16.msra.mxu0 0
      %974 = vmatpush.bf16.msra.mxu0 %v923
      %975 = vmatmul.bf16.gmra.mxu0 %v926
      %v976 = vpop.f32.mrf.mxu0
      %v977 = vadd.f32 0.0, %v976
      %v978 = vpop.f32.mrf.mxu0
      %v979 = vadd.f32 0.0, %v978
      %980 = vmatmul.bf16.gmra.mxu0 %v929
      %v981 = vpop.f32.mrf.mxu0
      %v982 = vadd.f32 0.0, %v981
      %v983 = vpop.f32.mrf.mxu0
      %v984 = vadd.f32 0.0, %v983
      %985 = vmatmul.bf16.gmra.mxu0 %v932
      %v986 = vpop.f32.mrf.mxu0
      %v987 = vadd.f32 0.0, %v986
      %v988 = vpop.f32.mrf.mxu0
      %v989 = vadd.f32 0.0, %v988
      %990 = vmatmul.bf16.gmra.mxu0 %v935
      %v991 = vpop.f32.mrf.mxu0
      %v992 = vadd.f32 0.0, %v991
      %v993 = vpop.f32.mrf.mxu0
      %v994 = vadd.f32 0.0, %v993
      %995 = vmatmul.bf16.gmra.mxu0 %v938
      %v996 = vpop.f32.mrf.mxu0
      %v997 = vadd.f32 0.0, %v996
      %v998 = vpop.f32.mrf.mxu0
      %v999 = vadd.f32 0.0, %v998
      %1000 = vmatmul.bf16.gmra.mxu0 %v941
      %v1001 = vpop.f32.mrf.mxu0
      %v1002 = vadd.f32 0.0, %v1001
      %v1003 = vpop.f32.mrf.mxu0
      %v1004 = vadd.f32 0.0, %v1003
      %1005 = vmatmul.bf16.gmra.mxu0 %v944
      %v1006 = vpop.f32.mrf.mxu0
      %v1007 = vadd.f32 0.0, %v1006
      %v1008 = vpop.f32.mrf.mxu0
      %v1009 = vadd.f32 0.0, %v1008
      %1010 = vmatmul.bf16.gmra.mxu0 %v947
      %v1011 = vpop.f32.mrf.mxu0
      %v1012 = vadd.f32 0.0, %v1011
      %v1013 = vpop.f32.mrf.mxu0
      %v1014 = vadd.f32 0.0, %v1013
      %1015 = vmatmul.bf16.gmra.mxu0 %v950
      %v1016 = vpop.f32.mrf.mxu0
      %v1017 = vadd.f32 0.0, %v1016
      %v1018 = vpop.f32.mrf.mxu0
      %v1019 = vadd.f32 0.0, %v1018
      %1020 = vmatmul.bf16.gmra.mxu0 %v953
      %v1021 = vpop.f32.mrf.mxu0
      %v1022 = vadd.f32 0.0, %v1021
      %v1023 = vpop.f32.mrf.mxu0
      %v1024 = vadd.f32 0.0, %v1023
      %1025 = vmatmul.bf16.gmra.mxu0 %v956
      %v1026 = vpop.f32.mrf.mxu0
      %v1027 = vadd.f32 0.0, %v1026
      %v1028 = vpop.f32.mrf.mxu0
      %v1029 = vadd.f32 0.0, %v1028
      %1030 = vmatmul.bf16.gmra.mxu0 %v959
      %v1031 = vpop.f32.mrf.mxu0
      %v1032 = vadd.f32 0.0, %v1031
      %v1033 = vpop.f32.mrf.mxu0
      %v1034 = vadd.f32 0.0, %v1033
      %1035 = vmatmul.bf16.gmra.mxu0 %v962
      %v1036 = vpop.f32.mrf.mxu0
      %v1037 = vadd.f32 0.0, %v1036
      %v1038 = vpop.f32.mrf.mxu0
      %v1039 = vadd.f32 0.0, %v1038
      %1040 = vmatmul.bf16.gmra.mxu0 %v965
      %v1041 = vpop.f32.mrf.mxu0
      %v1042 = vadd.f32 0.0, %v1041
      %v1043 = vpop.f32.mrf.mxu0
      %v1044 = vadd.f32 0.0, %v1043
      %1045 = vdwg.mxu0
      %v1046 = vadd.f32 %v782, %v977
      %v1047 = vadd.f32 %v783, %v979
      %v1048 = vadd.f32 %v784, %v982
      %v1049 = vadd.f32 %v785, %v984
      %v1050 = vadd.f32 %v786, %v987
      %v1051 = vadd.f32 %v787, %v989
      %v1052 = vadd.f32 %v788, %v992
      %v1053 = vadd.f32 %v789, %v994
      %v1054 = vadd.f32 %v790, %v997
      %v1055 = vadd.f32 %v791, %v999
      %v1056 = vadd.f32 %v792, %v1002
      %v1057 = vadd.f32 %v793, %v1004
      %v1058 = vadd.f32 %v794, %v1007
      %v1059 = vadd.f32 %v795, %v1009
      %v1060 = vadd.f32 %v796, %v1012
      %v1061 = vadd.f32 %v797, %v1014
      %v1062 = vadd.f32 %v798, %v1017
      %v1063 = vadd.f32 %v799, %v1019
      %v1064 = vadd.f32 %v800, %v1022
      %v1065 = vadd.f32 %v801, %v1024
      %v1066 = vadd.f32 %v802, %v1027
      %v1067 = vadd.f32 %v803, %v1029
      %v1068 = vadd.f32 %v804, %v1032
      %v1069 = vadd.f32 %v805, %v1034
      %v1070 = vadd.f32 %v806, %v1037
      %v1071 = vadd.f32 %v807, %v1039
      %v1072 = vadd.f32 %v808, %v1042
      %v1073 = vadd.f32 %v809, %v1044
      %s1074 = scalar_lea.vmem %s3, 16
      %v1075 = vld [vmem:[%s1074] sm:$0xf]
      %v1076 = vld [vmem:[%s1074 + $0x4] sm:$0xf]
      %vm1077 = vcmask 1046528
      %v1078 = vrot.slane %v640, 1
      %v1079 = vrot.slane %v641, 1
      %v1080 = vsel %vm1077, %v1078, %v1079
      %v1081 = vrot.slane %v642, 1
      %v1082 = vsel %vm1077, %v1079, %v1081
      %v1083 = vrot.slane %v643, 1
      %v1084 = vsel %vm1077, %v1081, %v1083
      %v1085 = vrot.slane %v644, 1
      %v1086 = vsel %vm1077, %v1083, %v1085
      %v1087 = vrot.slane %v645, 1
      %v1088 = vsel %vm1077, %v1085, %v1087
      %v1089 = vrot.slane %v646, 1
      %v1090 = vsel %vm1077, %v1087, %v1089
      %v1091 = vrot.slane %v647, 1
      %v1092 = vsel %vm1077, %v1089, %v1091
      %v1093 = vrot.slane %v648, 1
      %v1094 = vsel %vm1077, %v1091, %v1093
      %v1095 = vrot.slane %v649, 1
      %v1096 = vsel %vm1077, %v1093, %v1095
      %v1097 = vrot.slane %v650, 1
      %v1098 = vsel %vm1077, %v1095, %v1097
      %v1099 = vrot.slane %v651, 1
      %v1100 = vsel %vm1077, %v1097, %v1099
      %v1101 = vrot.slane %v652, 1
      %v1102 = vsel %vm1077, %v1099, %v1101
      %v1103 = vrot.slane %v653, 1
      %v1104 = vsel %vm1077, %v1101, %v1103
      %v1105 = vrot.slane %v815, 1
      %v1106 = vsel %vm1077, %v1103, %v1105
      %v1109 = vunpack.c.l.b16 %v1075
      %v1110 = vunpack.c.l.b16 %v1076
      %v1111 = vpack.c.b16 %v1110, %v1109
      %v1114 = vsel %vm660, %v1080, 0
      %v1117 = vsel %vm660, %v1082, 0
      %v1120 = vsel %vm660, %v1084, 0
      %v1123 = vsel %vm660, %v1086, 0
      %v1126 = vsel %vm660, %v1088, 0
      %v1129 = vsel %vm660, %v1090, 0
      %v1132 = vsel %vm660, %v1092, 0
      %v1135 = vsel %vm660, %v1094, 0
      %v1138 = vsel %vm660, %v1096, 0
      %v1141 = vsel %vm660, %v1098, 0
      %v1144 = vsel %vm660, %v1100, 0
      %v1147 = vsel %vm660, %v1102, 0
      %v1150 = vsel %vm660, %v1104, 0
      %v1153 = vsel %vm660, %v1106, 0
      %1155 = vmatpush.bf16.msra.mxu0 0
      %1156 = vmatpush.bf16.msra.mxu0 0
      %1157 = vmatpush.bf16.msra.mxu0 0
      %1158 = vmatpush.bf16.msra.mxu0 0
      %1159 = vmatpush.bf16.msra.mxu0 0
      %1160 = vmatpush.bf16.msra.mxu0 0
      %1161 = vmatpush.bf16.msra.mxu0 0
      %1162 = vmatpush.bf16.msra.mxu0 %v1111
      %1163 = vmatmul.bf16.gmra.mxu0 %v1114
      %v1164 = vpop.f32.mrf.mxu0
      %v1165 = vadd.f32 0.0, %v1164
      %v1166 = vpop.f32.mrf.mxu0
      %v1167 = vadd.f32 0.0, %v1166
      %1168 = vmatmul.bf16.gmra.mxu0 %v1117
      %v1169 = vpop.f32.mrf.mxu0
      %v1170 = vadd.f32 0.0, %v1169
      %v1171 = vpop.f32.mrf.mxu0
      %v1172 = vadd.f32 0.0, %v1171
      %1173 = vmatmul.bf16.gmra.mxu0 %v1120
      %v1174 = vpop.f32.mrf.mxu0
      %v1175 = vadd.f32 0.0, %v1174
      %v1176 = vpop.f32.mrf.mxu0
      %v1177 = vadd.f32 0.0, %v1176
      %1178 = vmatmul.bf16.gmra.mxu0 %v1123
      %v1179 = vpop.f32.mrf.mxu0
      %v1180 = vadd.f32 0.0, %v1179
      %v1181 = vpop.f32.mrf.mxu0
      %v1182 = vadd.f32 0.0, %v1181
      %1183 = vmatmul.bf16.gmra.mxu0 %v1126
      %v1184 = vpop.f32.mrf.mxu0
      %v1185 = vadd.f32 0.0, %v1184
      %v1186 = vpop.f32.mrf.mxu0
      %v1187 = vadd.f32 0.0, %v1186
      %1188 = vmatmul.bf16.gmra.mxu0 %v1129
      %v1189 = vpop.f32.mrf.mxu0
      %v1190 = vadd.f32 0.0, %v1189
      %v1191 = vpop.f32.mrf.mxu0
      %v1192 = vadd.f32 0.0, %v1191
      %1193 = vmatmul.bf16.gmra.mxu0 %v1132
      %v1194 = vpop.f32.mrf.mxu0
      %v1195 = vadd.f32 0.0, %v1194
      %v1196 = vpop.f32.mrf.mxu0
      %v1197 = vadd.f32 0.0, %v1196
      %1198 = vmatmul.bf16.gmra.mxu0 %v1135
      %v1199 = vpop.f32.mrf.mxu0
      %v1200 = vadd.f32 0.0, %v1199
      %v1201 = vpop.f32.mrf.mxu0
      %v1202 = vadd.f32 0.0, %v1201
      %1203 = vmatmul.bf16.gmra.mxu0 %v1138
      %v1204 = vpop.f32.mrf.mxu0
      %v1205 = vadd.f32 0.0, %v1204
      %v1206 = vpop.f32.mrf.mxu0
      %v1207 = vadd.f32 0.0, %v1206
      %1208 = vmatmul.bf16.gmra.mxu0 %v1141
      %v1209 = vpop.f32.mrf.mxu0
      %v1210 = vadd.f32 0.0, %v1209
      %v1211 = vpop.f32.mrf.mxu0
      %v1212 = vadd.f32 0.0, %v1211
      %1213 = vmatmul.bf16.gmra.mxu0 %v1144
      %v1214 = vpop.f32.mrf.mxu0
      %v1215 = vadd.f32 0.0, %v1214
      %v1216 = vpop.f32.mrf.mxu0
      %v1217 = vadd.f32 0.0, %v1216
      %1218 = vmatmul.bf16.gmra.mxu0 %v1147
      %v1219 = vpop.f32.mrf.mxu0
      %v1220 = vadd.f32 0.0, %v1219
      %v1221 = vpop.f32.mrf.mxu0
      %v1222 = vadd.f32 0.0, %v1221
      %1223 = vmatmul.bf16.gmra.mxu0 %v1150
      %v1224 = vpop.f32.mrf.mxu0
      %v1225 = vadd.f32 0.0, %v1224
      %v1226 = vpop.f32.mrf.mxu0
      %v1227 = vadd.f32 0.0, %v1226
      %1228 = vmatmul.bf16.gmra.mxu0 %v1153
      %v1229 = vpop.f32.mrf.mxu0
      %v1230 = vadd.f32 0.0, %v1229
      %v1231 = vpop.f32.mrf.mxu0
      %v1232 = vadd.f32 0.0, %v1231
      %1233 = vdwg.mxu0
      %v1234 = vadd.f32 %v1046, %v1165
      %v1235 = vadd.f32 %v1047, %v1167
      %v1236 = vadd.f32 %v1048, %v1170
      %v1237 = vadd.f32 %v1049, %v1172
      %v1238 = vadd.f32 %v1050, %v1175
      %v1239 = vadd.f32 %v1051, %v1177
      %v1240 = vadd.f32 %v1052, %v1180
      %v1241 = vadd.f32 %v1053, %v1182
      %v1242 = vadd.f32 %v1054, %v1185
      %v1243 = vadd.f32 %v1055, %v1187
      %v1244 = vadd.f32 %v1056, %v1190
      %v1245 = vadd.f32 %v1057, %v1192
      %v1246 = vadd.f32 %v1058, %v1195
      %v1247 = vadd.f32 %v1059, %v1197
      %v1248 = vadd.f32 %v1060, %v1200
      %v1249 = vadd.f32 %v1061, %v1202
      %v1250 = vadd.f32 %v1062, %v1205
      %v1251 = vadd.f32 %v1063, %v1207
      %v1252 = vadd.f32 %v1064, %v1210
      %v1253 = vadd.f32 %v1065, %v1212
      %v1254 = vadd.f32 %v1066, %v1215
      %v1255 = vadd.f32 %v1067, %v1217
      %v1256 = vadd.f32 %v1068, %v1220
      %v1257 = vadd.f32 %v1069, %v1222
      %v1258 = vadd.f32 %v1070, %v1225
      %v1259 = vadd.f32 %v1071, %v1227
      %v1260 = vadd.f32 %v1072, %v1230
      %v1261 = vadd.f32 %v1073, %v1232
      %s1262 = scalar_lea.vmem %s3, 24
      %v1263 = vld [vmem:[%s1262] sm:$0xf]
      %v1264 = vld [vmem:[%s1262 + $0x4] sm:$0xf]
      %v1266 = vunpack.c.l.b16 %v574
      %v1267 = vpack.c.b16 %v1266, %v814
      %v1270 = vunpack.c.l.b16 %v1263
      %v1271 = vunpack.c.l.b16 %v1264
      %v1272 = vpack.c.b16 %v1271, %v1270
      %v1275 = vsel %vm660, %v1267, 0
      %1277 = vmatpush.bf16.msra.mxu0 0
      %1278 = vmatpush.bf16.msra.mxu0 0
      %1279 = vmatpush.bf16.msra.mxu0 0
      %1280 = vmatpush.bf16.msra.mxu0 0
      %1281 = vmatpush.bf16.msra.mxu0 0
      %1282 = vmatpush.bf16.msra.mxu0 0
      %1283 = vmatpush.bf16.msra.mxu0 0
      %1284 = vmatpush.bf16.msra.mxu0 %v1272
      %1285 = vmatmul.bf16.gmra.mxu0 %v665
      %v1286 = vpop.f32.mrf.mxu0
      %v1287 = vadd.f32 0.0, %v1286
      %v1288 = vpop.f32.mrf.mxu0
      %v1289 = vadd.f32 0.0, %v1288
      %1290 = vmatmul.bf16.gmra.mxu0 %v668
      %v1291 = vpop.f32.mrf.mxu0
      %v1292 = vadd.f32 0.0, %v1291
      %v1293 = vpop.f32.mrf.mxu0
      %v1294 = vadd.f32 0.0, %v1293
      %1295 = vmatmul.bf16.gmra.mxu0 %v671
      %v1296 = vpop.f32.mrf.mxu0
      %v1297 = vadd.f32 0.0, %v1296
      %v1298 = vpop.f32.mrf.mxu0
      %v1299 = vadd.f32 0.0, %v1298
      %1300 = vmatmul.bf16.gmra.mxu0 %v674
      %v1301 = vpop.f32.mrf.mxu0
      %v1302 = vadd.f32 0.0, %v1301
      %v1303 = vpop.f32.mrf.mxu0
      %v1304 = vadd.f32 0.0, %v1303
      %1305 = vmatmul.bf16.gmra.mxu0 %v677
      %v1306 = vpop.f32.mrf.mxu0
      %v1307 = vadd.f32 0.0, %v1306
      %v1308 = vpop.f32.mrf.mxu0
      %v1309 = vadd.f32 0.0, %v1308
      %1310 = vmatmul.bf16.gmra.mxu0 %v680
      %v1311 = vpop.f32.mrf.mxu0
      %v1312 = vadd.f32 0.0, %v1311
      %v1313 = vpop.f32.mrf.mxu0
      %v1314 = vadd.f32 0.0, %v1313
      %1315 = vmatmul.bf16.gmra.mxu0 %v683
      %v1316 = vpop.f32.mrf.mxu0
      %v1317 = vadd.f32 0.0, %v1316
      %v1318 = vpop.f32.mrf.mxu0
      %v1319 = vadd.f32 0.0, %v1318
      %1320 = vmatmul.bf16.gmra.mxu0 %v686
      %v1321 = vpop.f32.mrf.mxu0
      %v1322 = vadd.f32 0.0, %v1321
      %v1323 = vpop.f32.mrf.mxu0
      %v1324 = vadd.f32 0.0, %v1323
      %1325 = vmatmul.bf16.gmra.mxu0 %v689
      %v1326 = vpop.f32.mrf.mxu0
      %v1327 = vadd.f32 0.0, %v1326
      %v1328 = vpop.f32.mrf.mxu0
      %v1329 = vadd.f32 0.0, %v1328
      %1330 = vmatmul.bf16.gmra.mxu0 %v692
      %v1331 = vpop.f32.mrf.mxu0
      %v1332 = vadd.f32 0.0, %v1331
      %v1333 = vpop.f32.mrf.mxu0
      %v1334 = vadd.f32 0.0, %v1333
      %1335 = vmatmul.bf16.gmra.mxu0 %v695
      %v1336 = vpop.f32.mrf.mxu0
      %v1337 = vadd.f32 0.0, %v1336
      %v1338 = vpop.f32.mrf.mxu0
      %v1339 = vadd.f32 0.0, %v1338
      %1340 = vmatmul.bf16.gmra.mxu0 %v698
      %v1341 = vpop.f32.mrf.mxu0
      %v1342 = vadd.f32 0.0, %v1341
      %v1343 = vpop.f32.mrf.mxu0
      %v1344 = vadd.f32 0.0, %v1343
      %1345 = vmatmul.bf16.gmra.mxu0 %v701
      %v1346 = vpop.f32.mrf.mxu0
      %v1347 = vadd.f32 0.0, %v1346
      %v1348 = vpop.f32.mrf.mxu0
      %v1349 = vadd.f32 0.0, %v1348
      %1350 = vmatmul.bf16.gmra.mxu0 %v1275
      %v1351 = vpop.f32.mrf.mxu0
      %v1352 = vadd.f32 0.0, %v1351
      %v1353 = vpop.f32.mrf.mxu0
      %v1354 = vadd.f32 0.0, %v1353
      %1355 = vdwg.mxu0
      %v1356 = vadd.f32 %v1234, %v1287
      %v1357 = vadd.f32 %v1235, %v1289
      %v1358 = vadd.f32 %v1236, %v1292
      %v1359 = vadd.f32 %v1237, %v1294
      %v1360 = vadd.f32 %v1238, %v1297
      %v1361 = vadd.f32 %v1239, %v1299
      %v1362 = vadd.f32 %v1240, %v1302
      %v1363 = vadd.f32 %v1241, %v1304
      %v1364 = vadd.f32 %v1242, %v1307
      %v1365 = vadd.f32 %v1243, %v1309
      %v1366 = vadd.f32 %v1244, %v1312
      %v1367 = vadd.f32 %v1245, %v1314
      %v1368 = vadd.f32 %v1246, %v1317
      %v1369 = vadd.f32 %v1247, %v1319
      %v1370 = vadd.f32 %v1248, %v1322
      %v1371 = vadd.f32 %v1249, %v1324
      %v1372 = vadd.f32 %v1250, %v1327
      %v1373 = vadd.f32 %v1251, %v1329
      %v1374 = vadd.f32 %v1252, %v1332
      %v1375 = vadd.f32 %v1253, %v1334
      %v1376 = vadd.f32 %v1254, %v1337
      %v1377 = vadd.f32 %v1255, %v1339
      %v1378 = vadd.f32 %v1256, %v1342
      %v1379 = vadd.f32 %v1257, %v1344
      %v1380 = vadd.f32 %v1258, %v1347
      %v1381 = vadd.f32 %v1259, %v1349
      %v1382 = vadd.f32 %v1260, %v1352
      %v1383 = vadd.f32 %v1261, %v1354
      %s1384 = scalar_lea.vmem %s3, 32
      %v1385 = vld [vmem:[%s1384] sm:$0xf]
      %v1386 = vld [vmem:[%s1384 + $0x4] sm:$0xf]
      %v1388 = vunpack.c.l.b16 %v575
      %v1389 = vpack.c.b16 %v1388, %v1388
      %v1390 = vshll.u32 %v1267, 16
      %v1392 = vrot.slane %v1390, 1
      %v1393 = vsel %vm816, %v913, %v1392
      %v1394 = vshrl.u32 %v1267, 16
      %v1396 = vor.u32 %v1394, %v1392
      %v1398 = vshll.u32 %v1389, 16
      %v1400 = vrot.slane %v1398, 1
      %v1401 = vsel %vm816, %v1396, %v1400
      %v1404 = vunpack.c.l.b16 %v1385
      %v1405 = vunpack.c.l.b16 %v1386
      %v1406 = vpack.c.b16 %v1405, %v1404
      %v1409 = vsel %vm660, %v1393, 0
      %v1412 = vsel %vm660, %v1401, 0
      %1414 = vmatpush.bf16.msra.mxu0 0
      %1415 = vmatpush.bf16.msra.mxu0 0
      %1416 = vmatpush.bf16.msra.mxu0 0
      %1417 = vmatpush.bf16.msra.mxu0 0
      %1418 = vmatpush.bf16.msra.mxu0 0
      %1419 = vmatpush.bf16.msra.mxu0 0
      %1420 = vmatpush.bf16.msra.mxu0 0
      %1421 = vmatpush.bf16.msra.mxu0 %v1406
      %1422 = vmatmul.bf16.gmra.mxu0 %v929
      %v1423 = vpop.f32.mrf.mxu0
      %v1424 = vadd.f32 0.0, %v1423
      %v1425 = vpop.f32.mrf.mxu0
      %v1426 = vadd.f32 0.0, %v1425
      %1427 = vmatmul.bf16.gmra.mxu0 %v932
      %v1428 = vpop.f32.mrf.mxu0
      %v1429 = vadd.f32 0.0, %v1428
      %v1430 = vpop.f32.mrf.mxu0
      %v1431 = vadd.f32 0.0, %v1430
      %1432 = vmatmul.bf16.gmra.mxu0 %v935
      %v1433 = vpop.f32.mrf.mxu0
      %v1434 = vadd.f32 0.0, %v1433
      %v1435 = vpop.f32.mrf.mxu0
      %v1436 = vadd.f32 0.0, %v1435
      %1437 = vmatmul.bf16.gmra.mxu0 %v938
      %v1438 = vpop.f32.mrf.mxu0
      %v1439 = vadd.f32 0.0, %v1438
      %v1440 = vpop.f32.mrf.mxu0
      %v1441 = vadd.f32 0.0, %v1440
      %1442 = vmatmul.bf16.gmra.mxu0 %v941
      %v1443 = vpop.f32.mrf.mxu0
      %v1444 = vadd.f32 0.0, %v1443
      %v1445 = vpop.f32.mrf.mxu0
      %v1446 = vadd.f32 0.0, %v1445
      %1447 = vmatmul.bf16.gmra.mxu0 %v944
      %v1448 = vpop.f32.mrf.mxu0
      %v1449 = vadd.f32 0.0, %v1448
      %v1450 = vpop.f32.mrf.mxu0
      %v1451 = vadd.f32 0.0, %v1450
      %1452 = vmatmul.bf16.gmra.mxu0 %v947
      %v1453 = vpop.f32.mrf.mxu0
      %v1454 = vadd.f32 0.0, %v1453
      %v1455 = vpop.f32.mrf.mxu0
      %v1456 = vadd.f32 0.0, %v1455
      %1457 = vmatmul.bf16.gmra.mxu0 %v950
      %v1458 = vpop.f32.mrf.mxu0
      %v1459 = vadd.f32 0.0, %v1458
      %v1460 = vpop.f32.mrf.mxu0
      %v1461 = vadd.f32 0.0, %v1460
      %1462 = vmatmul.bf16.gmra.mxu0 %v953
      %v1463 = vpop.f32.mrf.mxu0
      %v1464 = vadd.f32 0.0, %v1463
      %v1465 = vpop.f32.mrf.mxu0
      %v1466 = vadd.f32 0.0, %v1465
      %1467 = vmatmul.bf16.gmra.mxu0 %v956
      %v1468 = vpop.f32.mrf.mxu0
      %v1469 = vadd.f32 0.0, %v1468
      %v1470 = vpop.f32.mrf.mxu0
      %v1471 = vadd.f32 0.0, %v1470
      %1472 = vmatmul.bf16.gmra.mxu0 %v959
      %v1473 = vpop.f32.mrf.mxu0
      %v1474 = vadd.f32 0.0, %v1473
      %v1475 = vpop.f32.mrf.mxu0
      %v1476 = vadd.f32 0.0, %v1475
      %1477 = vmatmul.bf16.gmra.mxu0 %v962
      %v1478 = vpop.f32.mrf.mxu0
      %v1479 = vadd.f32 0.0, %v1478
      %v1480 = vpop.f32.mrf.mxu0
      %v1481 = vadd.f32 0.0, %v1480
      %1482 = vmatmul.bf16.gmra.mxu0 %v1409
      %v1483 = vpop.f32.mrf.mxu0
      %v1484 = vadd.f32 0.0, %v1483
      %v1485 = vpop.f32.mrf.mxu0
      %v1486 = vadd.f32 0.0, %v1485
      %1487 = vmatmul.bf16.gmra.mxu0 %v1412
      %v1488 = vpop.f32.mrf.mxu0
      %v1489 = vadd.f32 0.0, %v1488
      %v1490 = vpop.f32.mrf.mxu0
      %v1491 = vadd.f32 0.0, %v1490
      %1492 = vdwg.mxu0
      %v1493 = vadd.f32 %v1356, %v1424
      %v1494 = vadd.f32 %v1357, %v1426
      %v1495 = vadd.f32 %v1358, %v1429
      %v1496 = vadd.f32 %v1359, %v1431
      %v1497 = vadd.f32 %v1360, %v1434
      %v1498 = vadd.f32 %v1361, %v1436
      %v1499 = vadd.f32 %v1362, %v1439
      %v1500 = vadd.f32 %v1363, %v1441
      %v1501 = vadd.f32 %v1364, %v1444
      %v1502 = vadd.f32 %v1365, %v1446
      %v1503 = vadd.f32 %v1366, %v1449
      %v1504 = vadd.f32 %v1367, %v1451
      %v1505 = vadd.f32 %v1368, %v1454
      %v1506 = vadd.f32 %v1369, %v1456
      %v1507 = vadd.f32 %v1370, %v1459
      %v1508 = vadd.f32 %v1371, %v1461
      %v1509 = vadd.f32 %v1372, %v1464
      %v1510 = vadd.f32 %v1373, %v1466
      %v1511 = vadd.f32 %v1374, %v1469
      %v1512 = vadd.f32 %v1375, %v1471
      %v1513 = vadd.f32 %v1376, %v1474
      %v1514 = vadd.f32 %v1377, %v1476
      %v1515 = vadd.f32 %v1378, %v1479
      %v1516 = vadd.f32 %v1379, %v1481
      %v1517 = vadd.f32 %v1380, %v1484
      %v1518 = vadd.f32 %v1381, %v1486
      %v1519 = vadd.f32 %v1382, %v1489
      %v1520 = vadd.f32 %v1383, %v1491
      %s1521 = scalar_lea.vmem %s3, 40
      %v1522 = vld [vmem:[%s1521] sm:$0xf]
      %v1523 = vld [vmem:[%s1521 + $0x4] sm:$0xf]
      %v1524 = vrot.slane %v1267, 1
      %v1525 = vsel %vm1077, %v1103, %v1524
      %v1526 = vrot.slane %v1389, 1
      %v1527 = vsel %vm1077, %v1524, %v1526
      %v1530 = vunpack.c.l.b16 %v1522
      %v1531 = vunpack.c.l.b16 %v1523
      %v1532 = vpack.c.b16 %v1531, %v1530
      %v1535 = vsel %vm660, %v1525, 0
      %v1538 = vsel %vm660, %v1527, 0
      %1540 = vmatpush.bf16.msra.mxu0 0
      %1541 = vmatpush.bf16.msra.mxu0 0
      %1542 = vmatpush.bf16.msra.mxu0 0
      %1543 = vmatpush.bf16.msra.mxu0 0
      %1544 = vmatpush.bf16.msra.mxu0 0
      %1545 = vmatpush.bf16.msra.mxu0 0
      %1546 = vmatpush.bf16.msra.mxu0 0
      %1547 = vmatpush.bf16.msra.mxu0 %v1532
      %1548 = vmatmul.bf16.gmra.mxu0 %v1117
      %v1549 = vpop.f32.mrf.mxu0
      %v1550 = vadd.f32 0.0, %v1549
      %v1551 = vpop.f32.mrf.mxu0
      %v1552 = vadd.f32 0.0, %v1551
      %1553 = vmatmul.bf16.gmra.mxu0 %v1120
      %v1554 = vpop.f32.mrf.mxu0
      %v1555 = vadd.f32 0.0, %v1554
      %v1556 = vpop.f32.mrf.mxu0
      %v1557 = vadd.f32 0.0, %v1556
      %1558 = vmatmul.bf16.gmra.mxu0 %v1123
      %v1559 = vpop.f32.mrf.mxu0
      %v1560 = vadd.f32 0.0, %v1559
      %v1561 = vpop.f32.mrf.mxu0
      %v1562 = vadd.f32 0.0, %v1561
      %1563 = vmatmul.bf16.gmra.mxu0 %v1126
      %v1564 = vpop.f32.mrf.mxu0
      %v1565 = vadd.f32 0.0, %v1564
      %v1566 = vpop.f32.mrf.mxu0
      %v1567 = vadd.f32 0.0, %v1566
      %1568 = vmatmul.bf16.gmra.mxu0 %v1129
      %v1569 = vpop.f32.mrf.mxu0
      %v1570 = vadd.f32 0.0, %v1569
      %v1571 = vpop.f32.mrf.mxu0
      %v1572 = vadd.f32 0.0, %v1571
      %1573 = vmatmul.bf16.gmra.mxu0 %v1132
      %v1574 = vpop.f32.mrf.mxu0
      %v1575 = vadd.f32 0.0, %v1574
      %v1576 = vpop.f32.mrf.mxu0
      %v1577 = vadd.f32 0.0, %v1576
      %1578 = vmatmul.bf16.gmra.mxu0 %v1135
      %v1579 = vpop.f32.mrf.mxu0
      %v1580 = vadd.f32 0.0, %v1579
      %v1581 = vpop.f32.mrf.mxu0
      %v1582 = vadd.f32 0.0, %v1581
      %1583 = vmatmul.bf16.gmra.mxu0 %v1138
      %v1584 = vpop.f32.mrf.mxu0
      %v1585 = vadd.f32 0.0, %v1584
      %v1586 = vpop.f32.mrf.mxu0
      %v1587 = vadd.f32 0.0, %v1586
      %1588 = vmatmul.bf16.gmra.mxu0 %v1141
      %v1589 = vpop.f32.mrf.mxu0
      %v1590 = vadd.f32 0.0, %v1589
      %v1591 = vpop.f32.mrf.mxu0
      %v1592 = vadd.f32 0.0, %v1591
      %1593 = vmatmul.bf16.gmra.mxu0 %v1144
      %v1594 = vpop.f32.mrf.mxu0
      %v1595 = vadd.f32 0.0, %v1594
      %v1596 = vpop.f32.mrf.mxu0
      %v1597 = vadd.f32 0.0, %v1596
      %1598 = vmatmul.bf16.gmra.mxu0 %v1147
      %v1599 = vpop.f32.mrf.mxu0
      %v1600 = vadd.f32 0.0, %v1599
      %v1601 = vpop.f32.mrf.mxu0
      %v1602 = vadd.f32 0.0, %v1601
      %1603 = vmatmul.bf16.gmra.mxu0 %v1150
      %v1604 = vpop.f32.mrf.mxu0
      %v1605 = vadd.f32 0.0, %v1604
      %v1606 = vpop.f32.mrf.mxu0
      %v1607 = vadd.f32 0.0, %v1606
      %1608 = vmatmul.bf16.gmra.mxu0 %v1535
      %v1609 = vpop.f32.mrf.mxu0
      %v1610 = vadd.f32 0.0, %v1609
      %v1611 = vpop.f32.mrf.mxu0
      %v1612 = vadd.f32 0.0, %v1611
      %1613 = vmatmul.bf16.gmra.mxu0 %v1538
      %v1614 = vpop.f32.mrf.mxu0
      %v1615 = vadd.f32 0.0, %v1614
      %v1616 = vpop.f32.mrf.mxu0
      %v1617 = vadd.f32 0.0, %v1616
      %1618 = vdwg.mxu0
      %v1619 = vadd.f32 %v1493, %v1550
      %v1620 = vadd.f32 %v1494, %v1552
      %v1621 = vadd.f32 %v1495, %v1555
      %v1622 = vadd.f32 %v1496, %v1557
      %v1623 = vadd.f32 %v1497, %v1560
      %v1624 = vadd.f32 %v1498, %v1562
      %v1625 = vadd.f32 %v1499, %v1565
      %v1626 = vadd.f32 %v1500, %v1567
      %v1627 = vadd.f32 %v1501, %v1570
      %v1628 = vadd.f32 %v1502, %v1572
      %v1629 = vadd.f32 %v1503, %v1575
      %v1630 = vadd.f32 %v1504, %v1577
      %v1631 = vadd.f32 %v1505, %v1580
      %v1632 = vadd.f32 %v1506, %v1582
      %v1633 = vadd.f32 %v1507, %v1585
      %v1634 = vadd.f32 %v1508, %v1587
      %v1635 = vadd.f32 %v1509, %v1590
      %v1636 = vadd.f32 %v1510, %v1592
      %v1637 = vadd.f32 %v1511, %v1595
      %v1638 = vadd.f32 %v1512, %v1597
      %v1639 = vadd.f32 %v1513, %v1600
      %v1640 = vadd.f32 %v1514, %v1602
      %v1641 = vadd.f32 %v1515, %v1605
      %v1642 = vadd.f32 %v1516, %v1607
      %v1643 = vadd.f32 %v1517, %v1610
      %v1644 = vadd.f32 %v1518, %v1612
      %v1645 = vadd.f32 %v1519, %v1615
      %v1646 = vadd.f32 %v1520, %v1617
      %s1647 = scalar_lea.vmem %s3, 48
      %v1648 = vld [vmem:[%s1647] sm:$0xf]
      %v1649 = vld [vmem:[%s1647 + $0x4] sm:$0xf]
      %v1651 = vunpack.c.l.b16 %v576
      %v1652 = vpack.c.b16 %v1651, %v1388
      %v1655 = vunpack.c.l.b16 %v1648
      %v1656 = vunpack.c.l.b16 %v1649
      %v1657 = vpack.c.b16 %v1656, %v1655
      %v1660 = vsel %vm660, %v1652, 0
      %1662 = vmatpush.bf16.msra.mxu0 0
      %1663 = vmatpush.bf16.msra.mxu0 0
      %1664 = vmatpush.bf16.msra.mxu0 0
      %1665 = vmatpush.bf16.msra.mxu0 0
      %1666 = vmatpush.bf16.msra.mxu0 0
      %1667 = vmatpush.bf16.msra.mxu0 0
      %1668 = vmatpush.bf16.msra.mxu0 0
      %1669 = vmatpush.bf16.msra.mxu0 %v1657
      %1670 = vmatmul.bf16.gmra.mxu0 %v668
      %v1671 = vpop.f32.mrf.mxu0
      %v1672 = vadd.f32 0.0, %v1671
      %v1673 = vpop.f32.mrf.mxu0
      %v1674 = vadd.f32 0.0, %v1673
      %1675 = vmatmul.bf16.gmra.mxu0 %v671
      %v1676 = vpop.f32.mrf.mxu0
      %v1677 = vadd.f32 0.0, %v1676
      %v1678 = vpop.f32.mrf.mxu0
      %v1679 = vadd.f32 0.0, %v1678
      %1680 = vmatmul.bf16.gmra.mxu0 %v674
      %v1681 = vpop.f32.mrf.mxu0
      %v1682 = vadd.f32 0.0, %v1681
      %v1683 = vpop.f32.mrf.mxu0
      %v1684 = vadd.f32 0.0, %v1683
      %1685 = vmatmul.bf16.gmra.mxu0 %v677
      %v1686 = vpop.f32.mrf.mxu0
      %v1687 = vadd.f32 0.0, %v1686
      %v1688 = vpop.f32.mrf.mxu0
      %v1689 = vadd.f32 0.0, %v1688
      %1690 = vmatmul.bf16.gmra.mxu0 %v680
      %v1691 = vpop.f32.mrf.mxu0
      %v1692 = vadd.f32 0.0, %v1691
      %v1693 = vpop.f32.mrf.mxu0
      %v1694 = vadd.f32 0.0, %v1693
      %1695 = vmatmul.bf16.gmra.mxu0 %v683
      %v1696 = vpop.f32.mrf.mxu0
      %v1697 = vadd.f32 0.0, %v1696
      %v1698 = vpop.f32.mrf.mxu0
      %v1699 = vadd.f32 0.0, %v1698
      %1700 = vmatmul.bf16.gmra.mxu0 %v686
      %v1701 = vpop.f32.mrf.mxu0
      %v1702 = vadd.f32 0.0, %v1701
      %v1703 = vpop.f32.mrf.mxu0
      %v1704 = vadd.f32 0.0, %v1703
      %1705 = vmatmul.bf16.gmra.mxu0 %v689
      %v1706 = vpop.f32.mrf.mxu0
      %v1707 = vadd.f32 0.0, %v1706
      %v1708 = vpop.f32.mrf.mxu0
      %v1709 = vadd.f32 0.0, %v1708
      %1710 = vmatmul.bf16.gmra.mxu0 %v692
      %v1711 = vpop.f32.mrf.mxu0
      %v1712 = vadd.f32 0.0, %v1711
      %v1713 = vpop.f32.mrf.mxu0
      %v1714 = vadd.f32 0.0, %v1713
      %1715 = vmatmul.bf16.gmra.mxu0 %v695
      %v1716 = vpop.f32.mrf.mxu0
      %v1717 = vadd.f32 0.0, %v1716
      %v1718 = vpop.f32.mrf.mxu0
      %v1719 = vadd.f32 0.0, %v1718
      %1720 = vmatmul.bf16.gmra.mxu0 %v698
      %v1721 = vpop.f32.mrf.mxu0
      %v1722 = vadd.f32 0.0, %v1721
      %v1723 = vpop.f32.mrf.mxu0
      %v1724 = vadd.f32 0.0, %v1723
      %1725 = vmatmul.bf16.gmra.mxu0 %v701
      %v1726 = vpop.f32.mrf.mxu0
      %v1727 = vadd.f32 0.0, %v1726
      %v1728 = vpop.f32.mrf.mxu0
      %v1729 = vadd.f32 0.0, %v1728
      %1730 = vmatmul.bf16.gmra.mxu0 %v1275
      %v1731 = vpop.f32.mrf.mxu0
      %v1732 = vadd.f32 0.0, %v1731
      %v1733 = vpop.f32.mrf.mxu0
      %v1734 = vadd.f32 0.0, %v1733
      %1735 = vmatmul.bf16.gmra.mxu0 %v1660
      %v1736 = vpop.f32.mrf.mxu0
      %v1737 = vadd.f32 0.0, %v1736
      %v1738 = vpop.f32.mrf.mxu0
      %v1739 = vadd.f32 0.0, %v1738
      %1740 = vdwg.mxu0
      %v1741 = vadd.f32 %v1619, %v1672
      %v1742 = vadd.f32 %v1620, %v1674
      %v1743 = vadd.f32 %v1621, %v1677
      %v1744 = vadd.f32 %v1622, %v1679
      %v1745 = vadd.f32 %v1623, %v1682
      %v1746 = vadd.f32 %v1624, %v1684
      %v1747 = vadd.f32 %v1625, %v1687
      %v1748 = vadd.f32 %v1626, %v1689
      %v1749 = vadd.f32 %v1627, %v1692
      %v1750 = vadd.f32 %v1628, %v1694
      %v1751 = vadd.f32 %v1629, %v1697
      %v1752 = vadd.f32 %v1630, %v1699
      %v1753 = vadd.f32 %v1631, %v1702
      %v1754 = vadd.f32 %v1632, %v1704
      %v1755 = vadd.f32 %v1633, %v1707
      %v1756 = vadd.f32 %v1634, %v1709
      %v1757 = vadd.f32 %v1635, %v1712
      %v1758 = vadd.f32 %v1636, %v1714
      %v1759 = vadd.f32 %v1637, %v1717
      %v1760 = vadd.f32 %v1638, %v1719
      %v1761 = vadd.f32 %v1639, %v1722
      %v1762 = vadd.f32 %v1640, %v1724
      %v1763 = vadd.f32 %v1641, %v1727
      %v1764 = vadd.f32 %v1642, %v1729
      %v1765 = vadd.f32 %v1643, %v1732
      %v1766 = vadd.f32 %v1644, %v1734
      %v1767 = vadd.f32 %v1645, %v1737
      %v1768 = vadd.f32 %v1646, %v1739
      %s1769 = scalar_lea.vmem %s3, 56
      %v1770 = vld [vmem:[%s1769] sm:$0xf]
      %v1771 = vld [vmem:[%s1769 + $0x4] sm:$0xf]
      %v1773 = vunpack.c.l.b16 %v577
      %v1774 = vpack.c.b16 %v1773, %v1773
      %v1775 = vshll.u32 %v1652, 16
      %v1777 = vrot.slane %v1775, 1
      %v1778 = vsel %vm816, %v1396, %v1777
      %v1779 = vshrl.u32 %v1652, 16
      %v1781 = vor.u32 %v1779, %v1777
      %v1783 = vshll.u32 %v1774, 16
      %v1785 = vrot.slane %v1783, 1
      %v1786 = vsel %vm816, %v1781, %v1785
      %v1789 = vunpack.c.l.b16 %v1770
      %v1790 = vunpack.c.l.b16 %v1771
      %v1791 = vpack.c.b16 %v1790, %v1789
      %v1794 = vsel %vm660, %v1778, 0
      %v1797 = vsel %vm660, %v1786, 0
      %1799 = vmatpush.bf16.msra.mxu0 0
      %1800 = vmatpush.bf16.msra.mxu0 0
      %1801 = vmatpush.bf16.msra.mxu0 0
      %1802 = vmatpush.bf16.msra.mxu0 0
      %1803 = vmatpush.bf16.msra.mxu0 0
      %1804 = vmatpush.bf16.msra.mxu0 0
      %1805 = vmatpush.bf16.msra.mxu0 0
      %1806 = vmatpush.bf16.msra.mxu0 %v1791
      %1807 = vmatmul.bf16.gmra.mxu0 %v932
      %v1808 = vpop.f32.mrf.mxu0
      %v1809 = vadd.f32 0.0, %v1808
      %v1810 = vpop.f32.mrf.mxu0
      %v1811 = vadd.f32 0.0, %v1810
      %1812 = vmatmul.bf16.gmra.mxu0 %v935
      %v1813 = vpop.f32.mrf.mxu0
      %v1814 = vadd.f32 0.0, %v1813
      %v1815 = vpop.f32.mrf.mxu0
      %v1816 = vadd.f32 0.0, %v1815
      %1817 = vmatmul.bf16.gmra.mxu0 %v938
      %v1818 = vpop.f32.mrf.mxu0
      %v1819 = vadd.f32 0.0, %v1818
      %v1820 = vpop.f32.mrf.mxu0
      %v1821 = vadd.f32 0.0, %v1820
      %1822 = vmatmul.bf16.gmra.mxu0 %v941
      %v1823 = vpop.f32.mrf.mxu0
      %v1824 = vadd.f32 0.0, %v1823
      %v1825 = vpop.f32.mrf.mxu0
      %v1826 = vadd.f32 0.0, %v1825
      %1827 = vmatmul.bf16.gmra.mxu0 %v944
      %v1828 = vpop.f32.mrf.mxu0
      %v1829 = vadd.f32 0.0, %v1828
      %v1830 = vpop.f32.mrf.mxu0
      %v1831 = vadd.f32 0.0, %v1830
      %1832 = vmatmul.bf16.gmra.mxu0 %v947
      %v1833 = vpop.f32.mrf.mxu0
      %v1834 = vadd.f32 0.0, %v1833
      %v1835 = vpop.f32.mrf.mxu0
      %v1836 = vadd.f32 0.0, %v1835
      %1837 = vmatmul.bf16.gmra.mxu0 %v950
      %v1838 = vpop.f32.mrf.mxu0
      %v1839 = vadd.f32 0.0, %v1838
      %v1840 = vpop.f32.mrf.mxu0
      %v1841 = vadd.f32 0.0, %v1840
      %1842 = vmatmul.bf16.gmra.mxu0 %v953
      %v1843 = vpop.f32.mrf.mxu0
      %v1844 = vadd.f32 0.0, %v1843
      %v1845 = vpop.f32.mrf.mxu0
      %v1846 = vadd.f32 0.0, %v1845
      %1847 = vmatmul.bf16.gmra.mxu0 %v956
      %v1848 = vpop.f32.mrf.mxu0
      %v1849 = vadd.f32 0.0, %v1848
      %v1850 = vpop.f32.mrf.mxu0
      %v1851 = vadd.f32 0.0, %v1850
      %1852 = vmatmul.bf16.gmra.mxu0 %v959
      %v1853 = vpop.f32.mrf.mxu0
      %v1854 = vadd.f32 0.0, %v1853
      %v1855 = vpop.f32.mrf.mxu0
      %v1856 = vadd.f32 0.0, %v1855
      %1857 = vmatmul.bf16.gmra.mxu0 %v962
      %v1858 = vpop.f32.mrf.mxu0
      %v1859 = vadd.f32 0.0, %v1858
      %v1860 = vpop.f32.mrf.mxu0
      %v1861 = vadd.f32 0.0, %v1860
      %1862 = vmatmul.bf16.gmra.mxu0 %v1409
      %v1863 = vpop.f32.mrf.mxu0
      %v1864 = vadd.f32 0.0, %v1863
      %v1865 = vpop.f32.mrf.mxu0
      %v1866 = vadd.f32 0.0, %v1865
      %1867 = vmatmul.bf16.gmra.mxu0 %v1794
      %v1868 = vpop.f32.mrf.mxu0
      %v1869 = vadd.f32 0.0, %v1868
      %v1870 = vpop.f32.mrf.mxu0
      %v1871 = vadd.f32 0.0, %v1870
      %1872 = vmatmul.bf16.gmra.mxu0 %v1797
      %v1873 = vpop.f32.mrf.mxu0
      %v1874 = vadd.f32 0.0, %v1873
      %v1875 = vpop.f32.mrf.mxu0
      %v1876 = vadd.f32 0.0, %v1875
      %1877 = vdwg.mxu0
      %v1878 = vadd.f32 %v1741, %v1809
      %v1879 = vadd.f32 %v1742, %v1811
      %v1880 = vadd.f32 %v1743, %v1814
      %v1881 = vadd.f32 %v1744, %v1816
      %v1882 = vadd.f32 %v1745, %v1819
      %v1883 = vadd.f32 %v1746, %v1821
      %v1884 = vadd.f32 %v1747, %v1824
      %v1885 = vadd.f32 %v1748, %v1826
      %v1886 = vadd.f32 %v1749, %v1829
      %v1887 = vadd.f32 %v1750, %v1831
      %v1888 = vadd.f32 %v1751, %v1834
      %v1889 = vadd.f32 %v1752, %v1836
      %v1890 = vadd.f32 %v1753, %v1839
      %v1891 = vadd.f32 %v1754, %v1841
      %v1892 = vadd.f32 %v1755, %v1844
      %v1893 = vadd.f32 %v1756, %v1846
      %v1894 = vadd.f32 %v1757, %v1849
      %v1895 = vadd.f32 %v1758, %v1851
      %v1896 = vadd.f32 %v1759, %v1854
      %v1897 = vadd.f32 %v1760, %v1856
      %v1898 = vadd.f32 %v1761, %v1859
      %v1899 = vadd.f32 %v1762, %v1861
      %v1900 = vadd.f32 %v1763, %v1864
      %v1901 = vadd.f32 %v1764, %v1866
      %v1902 = vadd.f32 %v1765, %v1869
      %v1903 = vadd.f32 %v1766, %v1871
      %v1904 = vadd.f32 %v1767, %v1874
      %v1905 = vadd.f32 %v1768, %v1876
      %s1906 = scalar_lea.vmem %s3, 64
      %v1907 = vld [vmem:[%s1906] sm:$0xf]
      %v1908 = vld [vmem:[%s1906 + $0x4] sm:$0xf]
      %v1909 = vrot.slane %v1652, 1
      %v1910 = vsel %vm1077, %v1524, %v1909
      %v1911 = vrot.slane %v1774, 1
      %v1912 = vsel %vm1077, %v1909, %v1911
      %v1915 = vunpack.c.l.b16 %v1907
      %v1916 = vunpack.c.l.b16 %v1908
      %v1917 = vpack.c.b16 %v1916, %v1915
      %v1920 = vsel %vm660, %v1910, 0
      %v1923 = vsel %vm660, %v1912, 0
      %1925 = vmatpush.bf16.msra.mxu0 0
      %1926 = vmatpush.bf16.msra.mxu0 0
      %1927 = vmatpush.bf16.msra.mxu0 0
      %1928 = vmatpush.bf16.msra.mxu0 0
      %1929 = vmatpush.bf16.msra.mxu0 0
      %1930 = vmatpush.bf16.msra.mxu0 0
      %1931 = vmatpush.bf16.msra.mxu0 0
      %1932 = vmatpush.bf16.msra.mxu0 %v1917
      %1933 = vmatmul.bf16.gmra.mxu0 %v1120
      %v1934 = vpop.f32.mrf.mxu0
      %v1935 = vadd.f32 0.0, %v1934
      %v1936 = vpop.f32.mrf.mxu0
      %v1937 = vadd.f32 0.0, %v1936
      %1938 = vmatmul.bf16.gmra.mxu0 %v1123
      %v1939 = vpop.f32.mrf.mxu0
      %v1940 = vadd.f32 0.0, %v1939
      %v1941 = vpop.f32.mrf.mxu0
      %v1942 = vadd.f32 0.0, %v1941
      %1943 = vmatmul.bf16.gmra.mxu0 %v1126
      %v1944 = vpop.f32.mrf.mxu0
      %v1945 = vadd.f32 0.0, %v1944
      %v1946 = vpop.f32.mrf.mxu0
      %v1947 = vadd.f32 0.0, %v1946
      %1948 = vmatmul.bf16.gmra.mxu0 %v1129
      %v1949 = vpop.f32.mrf.mxu0
      %v1950 = vadd.f32 0.0, %v1949
      %v1951 = vpop.f32.mrf.mxu0
      %v1952 = vadd.f32 0.0, %v1951
      %1953 = vmatmul.bf16.gmra.mxu0 %v1132
      %v1954 = vpop.f32.mrf.mxu0
      %v1955 = vadd.f32 0.0, %v1954
      %v1956 = vpop.f32.mrf.mxu0
      %v1957 = vadd.f32 0.0, %v1956
      %1958 = vmatmul.bf16.gmra.mxu0 %v1135
      %v1959 = vpop.f32.mrf.mxu0
      %v1960 = vadd.f32 0.0, %v1959
      %v1961 = vpop.f32.mrf.mxu0
      %v1962 = vadd.f32 0.0, %v1961
      %1963 = vmatmul.bf16.gmra.mxu0 %v1138
      %v1964 = vpop.f32.mrf.mxu0
      %v1965 = vadd.f32 0.0, %v1964
      %v1966 = vpop.f32.mrf.mxu0
      %v1967 = vadd.f32 0.0, %v1966
      %1968 = vmatmul.bf16.gmra.mxu0 %v1141
      %v1969 = vpop.f32.mrf.mxu0
      %v1970 = vadd.f32 0.0, %v1969
      %v1971 = vpop.f32.mrf.mxu0
      %v1972 = vadd.f32 0.0, %v1971
      %1973 = vmatmul.bf16.gmra.mxu0 %v1144
      %v1974 = vpop.f32.mrf.mxu0
      %v1975 = vadd.f32 0.0, %v1974
      %v1976 = vpop.f32.mrf.mxu0
      %v1977 = vadd.f32 0.0, %v1976
      %1978 = vmatmul.bf16.gmra.mxu0 %v1147
      %v1979 = vpop.f32.mrf.mxu0
      %v1980 = vadd.f32 0.0, %v1979
      %v1981 = vpop.f32.mrf.mxu0
      %v1982 = vadd.f32 0.0, %v1981
      %1983 = vmatmul.bf16.gmra.mxu0 %v1150
      %v1984 = vpop.f32.mrf.mxu0
      %v1985 = vadd.f32 0.0, %v1984
      %v1986 = vpop.f32.mrf.mxu0
      %v1987 = vadd.f32 0.0, %v1986
      %1988 = vmatmul.bf16.gmra.mxu0 %v1535
      %v1989 = vpop.f32.mrf.mxu0
      %v1990 = vadd.f32 0.0, %v1989
      %v1991 = vpop.f32.mrf.mxu0
      %v1992 = vadd.f32 0.0, %v1991
      %1993 = vmatmul.bf16.gmra.mxu0 %v1920
      %v1994 = vpop.f32.mrf.mxu0
      %v1995 = vadd.f32 0.0, %v1994
      %v1996 = vpop.f32.mrf.mxu0
      %v1997 = vadd.f32 0.0, %v1996
      %1998 = vmatmul.bf16.gmra.mxu0 %v1923
      %v1999 = vpop.f32.mrf.mxu0
      %v2000 = vadd.f32 0.0, %v1999
      %v2001 = vpop.f32.mrf.mxu0
      %v2002 = vadd.f32 0.0, %v2001
      %2003 = vdwg.mxu0
      %v2004 = vadd.f32 %v1878, %v1935
      %v2005 = vadd.f32 %v1879, %v1937
      %v2006 = vadd.f32 %v1880, %v1940
      %v2007 = vadd.f32 %v1881, %v1942
      %v2008 = vadd.f32 %v1882, %v1945
      %v2009 = vadd.f32 %v1883, %v1947
      %v2010 = vadd.f32 %v1884, %v1950
      %v2011 = vadd.f32 %v1885, %v1952
      %v2012 = vadd.f32 %v1886, %v1955
      %v2013 = vadd.f32 %v1887, %v1957
      %v2014 = vadd.f32 %v1888, %v1960
      %v2015 = vadd.f32 %v1889, %v1962
      %v2016 = vadd.f32 %v1890, %v1965
      %v2017 = vadd.f32 %v1891, %v1967
      %v2018 = vadd.f32 %v1892, %v1970
      %v2019 = vadd.f32 %v1893, %v1972
      %v2020 = vadd.f32 %v1894, %v1975
      %v2021 = vadd.f32 %v1895, %v1977
      %v2022 = vadd.f32 %v1896, %v1980
      %v2023 = vadd.f32 %v1897, %v1982
      %v2024 = vadd.f32 %v1898, %v1985
      %v2025 = vadd.f32 %v1899, %v1987
      %v2026 = vadd.f32 %v1900, %v1990
      %v2027 = vadd.f32 %v1901, %v1992
      %v2028 = vadd.f32 %v1902, %v1995
      %v2029 = vadd.f32 %v1903, %v1997
      %v2030 = vadd.f32 %v1904, %v2000
      %v2031 = vadd.f32 %v1905, %v2002
      %v2032 = vmax.f32 %v2004, 0.0
      %v2033 = vmax.f32 %v2005, 0.0
      %v2034 = vmax.f32 %v2006, 0.0
      %v2035 = vmax.f32 %v2007, 0.0
      %v2036 = vmax.f32 %v2008, 0.0
      %v2037 = vmax.f32 %v2009, 0.0
      %v2038 = vmax.f32 %v2010, 0.0
      %v2039 = vmax.f32 %v2011, 0.0
      %v2040 = vmax.f32 %v2012, 0.0
      %v2041 = vmax.f32 %v2013, 0.0
      %v2042 = vmax.f32 %v2014, 0.0
      %v2043 = vmax.f32 %v2015, 0.0
      %v2044 = vmax.f32 %v2016, 0.0
      %v2045 = vmax.f32 %v2017, 0.0
      %v2046 = vmax.f32 %v2018, 0.0
      %v2047 = vmax.f32 %v2019, 0.0
      %v2048 = vmax.f32 %v2020, 0.0
      %v2049 = vmax.f32 %v2021, 0.0
      %v2050 = vmax.f32 %v2022, 0.0
      %v2051 = vmax.f32 %v2023, 0.0
      %v2052 = vmax.f32 %v2024, 0.0
      %v2053 = vmax.f32 %v2025, 0.0
      %v2054 = vmax.f32 %v2026, 0.0
      %v2055 = vmax.f32 %v2027, 0.0
      %v2056 = vmax.f32 %v2028, 0.0
      %v2057 = vmax.f32 %v2029, 0.0
      %v2058 = vmax.f32 %v2030, 0.0
      %v2059 = vmax.f32 %v2031, 0.0
      %vm2060 = vcmask 64512
      %2061 = vst.msk [vmem:[%s224] sm:$0xff] %vm2060, %v2032
      %vm2062 = vcmask 62464
      %2063 = vst.msk [vmem:[%s224 + $0x8] sm:$0x3f] %vm2062, %v2033
      %2064 = vst.msk [vmem:[%s224 + $0x10] sm:$0xff] %vm2060, %v2034
      %2065 = vst.msk [vmem:[%s224 + $0x18] sm:$0x3f] %vm2062, %v2035
      %2066 = vst.msk [vmem:[%s224 + $0x20] sm:$0xff] %vm2060, %v2036
      %2067 = vst.msk [vmem:[%s224 + $0x28] sm:$0x3f] %vm2062, %v2037
      %2068 = vst.msk [vmem:[%s224 + $0x30] sm:$0xff] %vm2060, %v2038
      %2069 = vst.msk [vmem:[%s224 + $0x38] sm:$0x3f] %vm2062, %v2039
      %2070 = vst.msk [vmem:[%s224 + $0x40] sm:$0xff] %vm2060, %v2040
      %2071 = vst.msk [vmem:[%s224 + $0x48] sm:$0x3f] %vm2062, %v2041
      %2072 = vst.msk [vmem:[%s224 + $0x50] sm:$0xff] %vm2060, %v2042
      %2073 = vst.msk [vmem:[%s224 + $0x58] sm:$0x3f] %vm2062, %v2043
      %2074 = vst.msk [vmem:[%s224 + $0x60] sm:$0xff] %vm2060, %v2044
      %2075 = vst.msk [vmem:[%s224 + $0x68] sm:$0x3f] %vm2062, %v2045
      %2076 = vst.msk [vmem:[%s224 + $0x70] sm:$0xff] %vm2060, %v2046
      %2077 = vst.msk [vmem:[%s224 + $0x78] sm:$0x3f] %vm2062, %v2047
      %2078 = vst.msk [vmem:[%s224 + $0x80] sm:$0xff] %vm2060, %v2048
      %2079 = vst.msk [vmem:[%s224 + $0x88] sm:$0x3f] %vm2062, %v2049
      %2080 = vst.msk [vmem:[%s224 + $0x90] sm:$0xff] %vm2060, %v2050
      %2081 = vst.msk [vmem:[%s224 + $0x98] sm:$0x3f] %vm2062, %v2051
      %2082 = vst.msk [vmem:[%s224 + $0xa0] sm:$0xff] %vm2060, %v2052
      %2083 = vst.msk [vmem:[%s224 + $0xa8] sm:$0x3f] %vm2062, %v2053
      %2084 = vst.msk [vmem:[%s224 + $0xb0] sm:$0xff] %vm2060, %v2054
      %2085 = vst.msk [vmem:[%s224 + $0xb8] sm:$0x3f] %vm2062, %v2055
      %2086 = vst.msk [vmem:[%s224 + $0xc0] sm:$0xff] %vm2060, %v2056
      %2087 = vst.msk [vmem:[%s224 + $0xc8] sm:$0x3f] %vm2062, %v2057
      %2088 = vst.msk [vmem:[%s224 + $0xd0] sm:$0xff] %vm2060, %v2058
      %2089 = vst.msk [vmem:[%s224 + $0xd8] sm:$0x3f] %vm2062, %v2059
      %p2090 = scmp.lt.s32.totalorder %s16, 1
      %s2091 = scalar_select %p2090, %s16, 1
      %s2092 = smul.addr %s2091, 28
      %s2093 = smul.addr %s2092, 8
      %s2094 = scalar_lea.vmem %s5, %s2093
      // Predicated region
      $region41: #{inception_base_route.1} parent=39 // pred_check
        %p2095 = pneg %p144
      $region42: #{inception_base_route.1} parent=39 // pred_check_branch
        %2097 = sbr.rel (%p2095) target = $region44
      $region43: #{inception_base_route.1} parent=39 // pred_region
        _
      $region44: #{inception_base_route.1} parent=39 // pred_fallthru
        _
    $region40: #{inception_base_route.1} parent=5 // pred_fallthru
      _
    %p2098 = scmp.le.s32.totalorder 2, %s11
    // Predicated region
    $region45: #{inception_base_route.1} parent=5 // pred_check
      %p2099 = pneg %p2098
    $region46: #{inception_base_route.1} parent=5 // pred_check_branch
      %2101 = sbr.rel (%p2099) target = $region48
    $region47: #{inception_base_route.1} parent=5 // pred_region
      %s2102 = ssub.s32 %s11, 2
      // Predicated region
      $region49: #{inception_base_route.1} parent=47 // pred_check
        %p2103 = pneg %p150
      $region50: #{inception_base_route.1} parent=47 // pred_check_branch
        %2105 = sbr.rel (%p2103) target = $region52
      $region51: #{inception_base_route.1} parent=47 // pred_region
        %p2106 = scmp.lt.s32.totalorder %s17, 1
        %s2107 = scalar_select %p2106, %s17, 1
        %s2108 = smul.addr %s2107, 28
        %s2109 = smul.addr %s2108, 8
        %s2110 = scalar_lea.vmem %s5, %s2109
      $region52: #{inception_base_route.1} parent=47 // pred_fallthru
        _
    $region48: #{inception_base_route.1} parent=5 // pred_fallthru
      _
  $region6: #{inception_base_route.1} parent=0 // loop_footer
    %s15 = sadd.s32 1, %s11
  $region7: #{inception_base_route.1} parent=0 // loop_footer_branch
    %10 = sbr.rel target = $region3
  $region8: #{inception_base_route.1} parent=0 // loop_exit
    _

</llo_original>
